<compile_context>
chip_gen: v6e
topology: v6e:2x2x1
jax: 0.10.0
libtpu: 0.0.40
codegen_flags: <defaults>
</compile_context>

<pallas_src>
import functools

import jax
import jax.numpy as jnp
from jax.experimental import pallas as pl
from jax.experimental.pallas import tpu as pltpu

BN_EPS = 1e-5
NEG_BIG = -1e30  # used to mask padded softmax lanes

# Rows of the packed (16,128) parameter slab.
_B1, _B2, _B3, _B4 = 0, 1, 2, 3
_G1, _G2, _G3 = 4, 5, 6
_BE1, _BE2, _BE3 = 7, 8, 9


def _round_up(n, m):
    return (n + m - 1) // m * m


def _nn_kernel(x_ref, w1_ref, wr_ref, vec_ref, out_ref,
               h1_ref, sum_ref, ssq_ref, *, b_real, b_pad, tile_b):
    i = pl.program_id(0)
    nsteps = pl.num_programs(0)

    # ---- per-step: stream one x tile through layer 1, accumulate BN-1 stats.
    @pl.when(i == 0)
    def _init():
        sum_ref[...] = jnp.zeros_like(sum_ref)
        ssq_ref[...] = jnp.zeros_like(ssq_ref)

    b1 = vec_ref[_B1:_B1 + 1, :]
    h1 = jnp.dot(x_ref[...], w1_ref[...],
                 preferred_element_type=jnp.float32) + b1
    h1 = jnp.maximum(h1, 0.0)

    if b_pad != b_real:  # static: only emit the mask if the batch was padded
        rows = i * tile_b + jax.lax.broadcasted_iota(jnp.int32, (tile_b, 1), 0)
        h1s = jnp.where(rows < b_real, h1, 0.0)
    else:
        h1s = h1

    sum_ref[...] += jnp.sum(h1s, axis=0, keepdims=True)
    ssq_ref[...] += jnp.sum(h1s * h1s, axis=0, keepdims=True)

    row0 = pl.multiple_of(i * tile_b, tile_b)
    h1_ref[pl.ds(row0, tile_b), :] = h1

    # ---- last step: finish BN-1 with full-batch stats, run the small layers.
    @pl.when(i == nsteps - 1)
    def _finish():
        inv_n = jnp.float32(1.0 / b_real)

        def bn_apply(h, mu, ex2, g, be):
            var = ex2 - mu * mu                       # fused one-pass variance
            scale = g * jax.lax.rsqrt(var + BN_EPS)
            shift = be - mu * scale
            return h * scale + shift                  # single FMA chain

        if b_pad != b_real:
            row_mask = (jax.lax.broadcasted_iota(jnp.int32, (b_pad, 1), 0)
                        < b_real)
        else:
            row_mask = None

        def bn_full(h, g, be):
            hm = h if row_mask is None else jnp.where(row_mask, h, 0.0)
            mu = jnp.sum(hm, axis=0, keepdims=True) * inv_n
            ex2 = jnp.sum(hm * hm, axis=0, keepdims=True) * inv_n
            return bn_apply(h, mu, ex2, g, be)

        b2 = vec_ref[_B2:_B2 + 1, :]
        b3 = vec_ref[_B3:_B3 + 1, :]
        b4 = vec_ref[_B4:_B4 + 1, :]
        g1 = vec_ref[_G1:_G1 + 1, :]
        g2 = vec_ref[_G2:_G2 + 1, :]
        g3 = vec_ref[_G3:_G3 + 1, :]
        be1 = vec_ref[_BE1:_BE1 + 1, :]
        be2 = vec_ref[_BE2:_BE2 + 1, :]
        be3 = vec_ref[_BE3:_BE3 + 1, :]

        # Block 1 BN from the accumulated full-batch stats.
        h = bn_apply(h1_ref[...], sum_ref[...] * inv_n, ssq_ref[...] * inv_n,
                     g1, be1)

        # Block 2
        h = jnp.maximum(
            jnp.dot(h, wr_ref[0], preferred_element_type=jnp.float32) + b2, 0.0)
        h = bn_full(h, g2, be2)

        # Block 3
        h = jnp.maximum(
            jnp.dot(h, wr_ref[1], preferred_element_type=jnp.float32) + b3, 0.0)
        h = bn_full(h, g3, be3)

        # Head: Linear(100,10) -> ReLU -> Softmax over the 10 real lanes.
        logits = jnp.maximum(
            jnp.dot(h, wr_ref[2], preferred_element_type=jnp.float32) + b4, 0.0)
        lane = jax.lax.broadcasted_iota(jnp.int32, (b_pad, 128), 1)
        logits = jnp.where(lane < 10, logits, jnp.float32(NEG_BIG))
        m = jnp.max(logits, axis=-1, keepdims=True)
        e = jnp.exp(logits - m)
        denom = jnp.sum(e, axis=-1, keepdims=True)
        out_ref[...] = e * pl.reciprocal(denom, approx=True)


@functools.partial(jax.jit, static_argnames=("tile_b",))
def nn_layernorm_forward(x, packed, *, tile_b=256):
    """x: (B, 784) float32.  packed: output of pack_params().  Returns (B, 10)."""
    B, K = x.shape
    assert K == 784
    # Effective batch tile: multiple of 16 (bf16 sublane packing), no larger
    # than the (padded) batch.
    tile = min(_round_up(tile_b, 16), _round_up(B, 16))
    b_pad = _round_up(B, tile)
    nsteps = b_pad // tile

    x_bf = x.astype(jnp.bfloat16)
    if b_pad != B:
        x_bf = jnp.pad(x_bf, ((0, b_pad - B), (0, 0)))

    kernel = functools.partial(_nn_kernel, b_real=B, b_pad=b_pad, tile_b=tile)

    out = pl.pallas_call(
        kernel,
        out_shape=jax.ShapeDtypeStruct((b_pad, 128), jnp.float32),
        grid_spec=pltpu.PrefetchScalarGridSpec(
            num_scalar_prefetch=0,
            grid=(nsteps,),
            in_specs=[
                pl.BlockSpec((tile, 784), lambda i: (i, 0)),      # streamed x
                pl.BlockSpec((784, 128), lambda i: (0, 0)),       # W1 (bf16)
                pl.BlockSpec((3, 128, 128), lambda i: (0, 0, 0)), # W2/W3/W4
                pl.BlockSpec((16, 128), lambda i: (0, 0)),        # bias/gamma/beta slab
            ],
            out_specs=pl.BlockSpec((b_pad, 128), lambda i: (0, 0)),
            scratch_shapes=[
                pltpu.VMEM((b_pad, 128), jnp.float32),  # resident layer-1 acts
                pltpu.VMEM((1, 128), jnp.float32),      # per-feature sum
                pltpu.VMEM((1, 128), jnp.float32),      # per-feature sum-of-sq
            ],
        ),
        compiler_params=pltpu.CompilerParams(
            dimension_semantics=("arbitrary",),   # batch axis carries BN stats
            vmem_limit_bytes=48 * 1024 * 1024,    # safe on v5e/v6e/v7x
        ),
    )(x_bf, packed["w1"], packed["w_rest"], packed["vec"])

    return out[:B, :10]


def init_params(key):
    """PyTorch-style init: U(-1/sqrt(fan_in), 1/sqrt(fan_in)) for Linear
    weights/biases; BatchNorm gamma=1, beta=0.  Weights stored as
    (in_features, out_features) (PyTorch stores (out,in); pre-transposed)."""
    dims = [(784, 100), (100, 100), (100, 100), (100, 10)]
    params = {}
    keys = jax.random.split(key, 8)
    for idx, (fan_in, fan_out) in enumerate(dims, start=1):
        bound = 1.0 / float(jnp.sqrt(jnp.float32(fan_in)))
        params[f"w{idx}"] = jax.random.uniform(
            keys[2 * (idx - 1)], (fan_in, fan_out),
            minval=-bound, maxval=bound, dtype=jnp.float32)
        params[f"b{idx}"] = jax.random.uniform(
            keys[2 * (idx - 1) + 1], (fan_out,),
            minval=-bound, maxval=bound, dtype=jnp.float32)
    for idx in (1, 2, 3):
        params[f"g{idx}"] = jnp.ones((100,), jnp.float32)
        params[f"be{idx}"] = jnp.zeros((100,), jnp.float32)
    return params


def pack_params(params):
    """Pad feature dims to 128 lanes and pack into 3 kernel inputs."""
    def pad_w(w, in_pad=None):
        fin, fout = w.shape
        in_pad = fin if in_pad is None else in_pad
        return jnp.zeros((in_pad, 128), jnp.float32).at[:fin, :fout].set(w)

    def pad_v(v):
        v = v.reshape(-1)
        return jnp.zeros((128,), jnp.float32).at[: v.shape[0]].set(v)

    w1 = pad_w(params["w1"]).astype(jnp.bfloat16)          # (784,128) bf16
    w_rest = jnp.stack(
        [pad_w(params["w2"], 128), pad_w(params["w3"], 128),
         pad_w(params["w4"], 128)], axis=0).astype(jnp.float32)  # (3,128,128)

    rows = [params["b1"], params["b2"], params["b3"], params["b4"],
            params["g1"], params["g2"], params["g3"],
            params["be1"], params["be2"], params["be3"]]
    vec = jnp.zeros((16, 128), jnp.float32).at[:10, :].set(
        jnp.stack([pad_v(r) for r in rows], axis=0))
    return {"w1": w1, "w_rest": w_rest, "vec": vec}


def reference_forward(x, params, *, bf16_layer1=False):
    """Pure-JAX reference.  bf16_layer1=True mirrors the kernel's bf16 storage
    of x/W1 (f32 everywhere else) for a tight comparison."""
    def bn(h, g, be):
        mu = jnp.mean(h, axis=0, keepdims=True)
        var = jnp.mean((h - mu) ** 2, axis=0, keepdims=True)
        return (h - mu) / jnp.sqrt(var + BN_EPS) * g + be

    if bf16_layer1:
        h = jnp.dot(x.astype(jnp.bfloat16), params["w1"].astype(jnp.bfloat16),
                    preferred_element_type=jnp.float32) + params["b1"]
    else:
        h = x @ params["w1"] + params["b1"]
    h = bn(jnp.maximum(h, 0.0), params["g1"], params["be1"])
    h = bn(jnp.maximum(h @ params["w2"] + params["b2"], 0.0),
           params["g2"], params["be2"])
    h = bn(jnp.maximum(h @ params["w3"] + params["b3"], 0.0),
           params["g3"], params["be3"])
    logits = jnp.maximum(h @ params["w4"] + params["b4"], 0.0)
    return jax.nn.softmax(logits, axis=-1)


if __name__ == "__main__":
    key = jax.random.PRNGKey(0)
    k_x, k_p = jax.random.split(key)

    B = 36  # small; not a multiple of the tile -> exercises the padding/mask path
    x = jax.random.normal(k_x, (B, 784), dtype=jnp.float32)
    params = init_params(k_p)
    packed = pack_params(params)

    # Small tile so the demo runs multiple grid steps (3) with resident stats.
    out = nn_layernorm_forward(x, packed, tile_b=16)
    out = jax.block_until_ready(out)

    ref_same_prec = reference_forward(x, params, bf16_layer1=True)
    ref_f32 = reference_forward(x, params, bf16_layer1=False)

    assert out.shape == (B, 10)
    assert bool(jnp.all(jnp.isfinite(out)))
    # Rows sum to ~1 (approx reciprocal in the softmax denominator).
    assert jnp.allclose(jnp.sum(out, axis=-1), 1.0, atol=2e-2)
    # Tight check vs. a reference using the same bf16 layer-1 inputs.
    assert jnp.allclose(out, ref_same_prec, atol=1e-2)
    # Looser check vs. the pure-f32 PyTorch-semantics reference.
    assert jnp.allclose(out, ref_f32, atol=3e-2)

    print("KERNEL_OK")
</pallas_src>

<mosaic_0001>
module attributes {stable_mosaic.version = 11 : i64} {
  func.func @_nn_kernel(%arg0: i32, %arg1: memref<16x784xbf16, #tpu.memory_space<vmem>>, %arg2: memref<784x128xbf16, #tpu.memory_space<vmem>>, %arg3: memref<3x128x128xf32, #tpu.memory_space<vmem>>, %arg4: memref<16x128xf32, #tpu.memory_space<vmem>>, %arg5: memref<48x128xf32, #tpu.memory_space<vmem>>, %arg6: memref<48x128xf32, #tpu.memory_space<vmem>>, %arg7: memref<1x128xf32, #tpu.memory_space<vmem>>, %arg8: memref<1x128xf32, #tpu.memory_space<vmem>>) attributes {dimension_semantics = [#tpu.dimension_semantics<arbitrary>], iteration_bounds = array<i64: 3>, scalar_prefetch = 0 : i64, scratch_operands = 3 : i64, tpu.core_type = #tpu.core_type<tc>, window_params = [{transform_indices = @transform_0, window_bounds = array<i64: 16, 784>}, {pipeline_mode = #tpu.pipeline_mode<synchronous>, transform_indices = @transform_1, window_bounds = array<i64: 784, 128>}, {pipeline_mode = #tpu.pipeline_mode<synchronous>, transform_indices = @transform_2, window_bounds = array<i64: 3, 128, 128>}, {pipeline_mode = #tpu.pipeline_mode<synchronous>, transform_indices = @transform_3, window_bounds = array<i64: 16, 128>}, {pipeline_mode = #tpu.pipeline_mode<synchronous>, transform_indices = @transform_4, window_bounds = array<i64: 48, 128>}]} {
    %c0_i32 = arith.constant 0 : i32
    %0 = arith.cmpi eq, %arg0, %c0_i32 : i32
    %1 = arith.extui %0 : i1 to i32
    %c0_i32_0 = arith.constant 0 : i32
    %2 = arith.cmpi ne, %1, %c0_i32_0 : i32
    scf.if %2 {
      %cst_21 = arith.constant 0.000000e+00 : f32
      %39 = vector.broadcast %cst_21 : f32 to vector<1x128xf32>
      %c0_22 = arith.constant 0 : index
      %c0_23 = arith.constant 0 : index
      %40 = vector.load %arg7[%c0_22, %c0_23] : memref<1x128xf32, #tpu.memory_space<vmem>>, vector<1x128xf32>
      tpu.vector_store %arg7[%c0_22, %c0_23], %39 {strides = array<i32>} : memref<1x128xf32, #tpu.memory_space<vmem>>, vector<1x128xf32>,
      %cst_24 = arith.constant 0.000000e+00 : f32
      %41 = vector.broadcast %cst_24 : f32 to vector<1x128xf32>
      %c0_25 = arith.constant 0 : index
      %c0_26 = arith.constant 0 : index
      %42 = vector.load %arg8[%c0_25, %c0_26] : memref<1x128xf32, #tpu.memory_space<vmem>>, vector<1x128xf32>
      tpu.vector_store %arg8[%c0_25, %c0_26], %41 {strides = array<i32>} : memref<1x128xf32, #tpu.memory_space<vmem>>, vector<1x128xf32>,
    } else {
    }
    %c0 = arith.constant 0 : index
    %c0_1 = arith.constant 0 : index
    %3 = vector.load %arg4[%c0, %c0_1] : memref<16x128xf32, #tpu.memory_space<vmem>>, vector<1x128xf32>
    %c0_2 = arith.constant 0 : index
    %c0_3 = arith.constant 0 : index
    %4 = vector.load %arg1[%c0_2, %c0_3] : memref<16x784xbf16, #tpu.memory_space<vmem>>, vector<16x784xbf16>
    %c0_4 = arith.constant 0 : index
    %c0_5 = arith.constant 0 : index
    %5 = vector.load %arg2[%c0_4, %c0_5] : memref<784x128xbf16, #tpu.memory_space<vmem>>, vector<784x128xbf16>
    %cst = arith.constant dense<0.000000e+00> : vector<16x128xf32>
    %6 = tpu.matmul %4, %5, %cst {dimension_numbers = #tpu.dot_dimension_numbers<[1], [0], [0], [1], [0, 0, 1, 1], [], []>} : vector<16x784xbf16>, vector<784x128xbf16>, vector<16x128xf32> -> vector<16x128xf32>
    %7 = vector.broadcast %3 : vector<1x128xf32> to vector<16x128xf32>
    %8 = arith.addf %6, %7 : vector<16x128xf32>
    %cst_6 = arith.constant 0.000000e+00 : f32
    %9 = vector.broadcast %cst_6 : f32 to vector<16x128xf32>
    %10 = arith.maximumf %8, %9 : vector<16x128xf32>
    %c16_i32 = arith.constant 16 : i32
    %11 = arith.muli %arg0, %c16_i32 : i32
    %12 = tpu.iota {dimensions = array<i32: 0>} : vector<16x1xi32>
    %13 = vector.broadcast %11 : i32 to vector<16x1xi32>
    %14 = arith.addi %13, %12 : vector<16x1xi32>
    %c36_i32 = arith.constant 36 : i32
    %15 = vector.broadcast %c36_i32 : i32 to vector<16x1xi32>
    %16 = arith.cmpi slt, %14, %15 : vector<16x1xi32>
    %cst_7 = arith.constant 0.000000e+00 : f32
    %17 = vector.shape_cast %16 : vector<16x1xi1> to vector<16x1xi1>
    %18 = vector.broadcast %17 : vector<16x1xi1> to vector<16x128xi1>
    %19 = vector.broadcast %cst_7 : f32 to vector<16x128xf32>
    %20 = arith.select %18, %10, %19 : vector<16x128xi1>, vector<16x128xf32>
    %c0_8 = arith.constant 0 : index
    %c0_9 = arith.constant 0 : index
    %21 = vector.load %arg7[%c0_8, %c0_9] : memref<1x128xf32, #tpu.memory_space<vmem>>, vector<1x128xf32>
    %cst_10 = arith.constant dense<0.000000e+00> : vector<128xf32>
    %22 = vector.multi_reduction <add>, %20, %cst_10 [0] : vector<16x128xf32> to vector<128xf32>
    %23 = vector.shape_cast %22 : vector<128xf32> to vector<1x128xf32>
    %24 = arith.addf %21, %23 : vector<1x128xf32>
    %c0_11 = arith.constant 0 : index
    %c0_12 = arith.constant 0 : index
    %25 = vector.load %arg7[%c0_11, %c0_12] : memref<1x128xf32, #tpu.memory_space<vmem>>, vector<1x128xf32>
    tpu.vector_store %arg7[%c0_11, %c0_12], %24 {strides = array<i32>} : memref<1x128xf32, #tpu.memory_space<vmem>>, vector<1x128xf32>,
    %c0_13 = arith.constant 0 : index
    %c0_14 = arith.constant 0 : index
    %26 = vector.load %arg8[%c0_13, %c0_14] : memref<1x128xf32, #tpu.memory_space<vmem>>, vector<1x128xf32>
    %27 = arith.mulf %20, %20 : vector<16x128xf32>
    %cst_15 = arith.constant dense<0.000000e+00> : vector<128xf32>
    %28 = vector.multi_reduction <add>, %27, %cst_15 [0] : vector<16x128xf32> to vector<128xf32>
    %29 = vector.shape_cast %28 : vector<128xf32> to vector<1x128xf32>
    %30 = arith.addf %26, %29 : vector<1x128xf32>
    %c0_16 = arith.constant 0 : index
    %c0_17 = arith.constant 0 : index
    %31 = vector.load %arg8[%c0_16, %c0_17] : memref<1x128xf32, #tpu.memory_space<vmem>>, vector<1x128xf32>
    tpu.vector_store %arg8[%c0_16, %c0_17], %30 {strides = array<i32>} : memref<1x128xf32, #tpu.memory_space<vmem>>, vector<1x128xf32>,
    %c16_i32_18 = arith.constant 16 : i32
    %32 = arith.muli %arg0, %c16_i32_18 : i32
    %33 = tpu.assume_multiple %32, 16 : i32
    %34 = arith.index_cast %33 : i32 to index
    %c0_19 = arith.constant 0 : index
    %35 = vector.load %arg6[%34, %c0_19] : memref<48x128xf32, #tpu.memory_space<vmem>>, vector<16x128xf32>
    tpu.vector_store %arg6[%34, %c0_19], %10 {strides = array<i32>} : memref<48x128xf32, #tpu.memory_space<vmem>>, vector<16x128xf32>,
    %c2_i32 = arith.constant 2 : i32
    %36 = arith.cmpi eq, %arg0, %c2_i32 : i32
    %37 = arith.extui %36 : i1 to i32
    %c0_i32_20 = arith.constant 0 : i32
    %38 = arith.cmpi ne, %37, %c0_i32_20 : i32
    scf.if %38 {
      %39 = tpu.iota {dimensions = array<i32: 0>} : vector<48x1xi32>
      %c36_i32_21 = arith.constant 36 : i32
      %40 = vector.broadcast %c36_i32_21 : i32 to vector<48x1xi32>
      %41 = arith.cmpi slt, %39, %40 : vector<48x1xi32>
      %c1 = arith.constant 1 : index
      %c0_22 = arith.constant 0 : index
      %42 = vector.load %arg4[%c1, %c0_22] : memref<16x128xf32, #tpu.memory_space<vmem>>, vector<1x128xf32>
      %c2 = arith.constant 2 : index
      %c0_23 = arith.constant 0 : index
      %43 = vector.load %arg4[%c2, %c0_23] : memref<16x128xf32, #tpu.memory_space<vmem>>, vector<1x128xf32>
      %c3 = arith.constant 3 : index
      %c0_24 = arith.constant 0 : index
      %44 = vector.load %arg4[%c3, %c0_24] : memref<16x128xf32, #tpu.memory_space<vmem>>, vector<1x128xf32>
      %c4 = arith.constant 4 : index
      %c0_25 = arith.constant 0 : index
      %45 = vector.load %arg4[%c4, %c0_25] : memref<16x128xf32, #tpu.memory_space<vmem>>, vector<1x128xf32>
      %c5 = arith.constant 5 : index
      %c0_26 = arith.constant 0 : index
      %46 = vector.load %arg4[%c5, %c0_26] : memref<16x128xf32, #tpu.memory_space<vmem>>, vector<1x128xf32>
      %c6 = arith.constant 6 : index
      %c0_27 = arith.constant 0 : index
      %47 = vector.load %arg4[%c6, %c0_27] : memref<16x128xf32, #tpu.memory_space<vmem>>, vector<1x128xf32>
      %c7 = arith.constant 7 : index
      %c0_28 = arith.constant 0 : index
      %48 = vector.load %arg4[%c7, %c0_28] : memref<16x128xf32, #tpu.memory_space<vmem>>, vector<1x128xf32>
      %c8 = arith.constant 8 : index
      %c0_29 = arith.constant 0 : index
      %49 = vector.load %arg4[%c8, %c0_29] : memref<16x128xf32, #tpu.memory_space<vmem>>, vector<1x128xf32>
      %c9 = arith.constant 9 : index
      %c0_30 = arith.constant 0 : index
      %50 = vector.load %arg4[%c9, %c0_30] : memref<16x128xf32, #tpu.memory_space<vmem>>, vector<1x128xf32>
      %c0_31 = arith.constant 0 : index
      %c0_32 = arith.constant 0 : index
      %51 = vector.load %arg6[%c0_31, %c0_32] : memref<48x128xf32, #tpu.memory_space<vmem>>, vector<48x128xf32>
      %c0_33 = arith.constant 0 : index
      %c0_34 = arith.constant 0 : index
      %52 = vector.load %arg7[%c0_33, %c0_34] : memref<1x128xf32, #tpu.memory_space<vmem>>, vector<1x128xf32>
      %cst_35 = arith.constant 0.027777778 : f32
      %53 = vector.broadcast %cst_35 : f32 to vector<1x128xf32>
      %54 = arith.mulf %52, %53 : vector<1x128xf32>
      %c0_36 = arith.constant 0 : index
      %c0_37 = arith.constant 0 : index
      %55 = vector.load %arg8[%c0_36, %c0_37] : memref<1x128xf32, #tpu.memory_space<vmem>>, vector<1x128xf32>
      %cst_38 = arith.constant 0.027777778 : f32
      %56 = vector.broadcast %cst_38 : f32 to vector<1x128xf32>
      %57 = arith.mulf %55, %56 : vector<1x128xf32>
      %58 = arith.mulf %54, %54 : vector<1x128xf32>
      %59 = arith.subf %57, %58 : vector<1x128xf32>
      %cst_39 = arith.constant 9.99999974E-6 : f32
      %60 = vector.broadcast %cst_39 : f32 to vector<1x128xf32>
      %61 = arith.addf %59, %60 : vector<1x128xf32>
      %62 = math.rsqrt %61 : vector<1x128xf32>
      %63 = arith.mulf %45, %62 : vector<1x128xf32>
      %64 = arith.mulf %54, %63 : vector<1x128xf32>
      %65 = arith.subf %48, %64 : vector<1x128xf32>
      %66 = vector.broadcast %63 : vector<1x128xf32> to vector<48x128xf32>
      %67 = arith.mulf %51, %66 : vector<48x128xf32>
      %68 = vector.broadcast %65 : vector<1x128xf32> to vector<48x128xf32>
      %69 = arith.addf %67, %68 : vector<48x128xf32>
      %c0_40 = arith.constant 0 : index
      %c0_41 = arith.constant 0 : index
      %c0_42 = arith.constant 0 : index
      %70 = vector.load %arg3[%c0_40, %c0_41, %c0_42] : memref<3x128x128xf32, #tpu.memory_space<vmem>>, vector<1x128x128xf32>
      %71 = vector.shape_cast %70 : vector<1x128x128xf32> to vector<128x128xf32>
      %cst_43 = arith.constant dense<0.000000e+00> : vector<48x128xf32>
      %72 = tpu.matmul %69, %71, %cst_43 {dimension_numbers = #tpu.dot_dimension_numbers<[1], [0], [0], [1], [0, 0, 1, 1], [], []>} : vector<48x128xf32>, vector<128x128xf32>, vector<48x128xf32> -> vector<48x128xf32>
      %73 = vector.broadcast %42 : vector<1x128xf32> to vector<48x128xf32>
      %74 = arith.addf %72, %73 : vector<48x128xf32>
      %cst_44 = arith.constant 0.000000e+00 : f32
      %75 = vector.broadcast %cst_44 : f32 to vector<48x128xf32>
      %76 = arith.maximumf %74, %75 : vector<48x128xf32>
      %cst_45 = arith.constant 0.000000e+00 : f32
      %77 = vector.shape_cast %41 : vector<48x1xi1> to vector<48x1xi1>
      %78 = vector.broadcast %77 : vector<48x1xi1> to vector<48x128xi1>
      %79 = vector.broadcast %cst_45 : f32 to vector<48x128xf32>
      %80 = arith.select %78, %76, %79 : vector<48x128xi1>, vector<48x128xf32>
      %cst_46 = arith.constant dense<0.000000e+00> : vector<128xf32>
      %81 = vector.multi_reduction <add>, %80, %cst_46 [0] : vector<48x128xf32> to vector<128xf32>
      %82 = vector.shape_cast %81 : vector<128xf32> to vector<1x128xf32>
      %cst_47 = arith.constant 0.027777778 : f32
      %83 = vector.broadcast %cst_47 : f32 to vector<1x128xf32>
      %84 = arith.mulf %82, %83 : vector<1x128xf32>
      %85 = arith.mulf %80, %80 : vector<48x128xf32>
      %cst_48 = arith.constant dense<0.000000e+00> : vector<128xf32>
      %86 = vector.multi_reduction <add>, %85, %cst_48 [0] : vector<48x128xf32> to vector<128xf32>
      %87 = vector.shape_cast %86 : vector<128xf32> to vector<1x128xf32>
      %cst_49 = arith.constant 0.027777778 : f32
      %88 = vector.broadcast %cst_49 : f32 to vector<1x128xf32>
      %89 = arith.mulf %87, %88 : vector<1x128xf32>
      %90 = arith.mulf %84, %84 : vector<1x128xf32>
      %91 = arith.subf %89, %90 : vector<1x128xf32>
      %cst_50 = arith.constant 9.99999974E-6 : f32
      %92 = vector.broadcast %cst_50 : f32 to vector<1x128xf32>
      %93 = arith.addf %91, %92 : vector<1x128xf32>
      %94 = math.rsqrt %93 : vector<1x128xf32>
      %95 = arith.mulf %46, %94 : vector<1x128xf32>
      %96 = arith.mulf %84, %95 : vector<1x128xf32>
      %97 = arith.subf %49, %96 : vector<1x128xf32>
      %98 = vector.broadcast %95 : vector<1x128xf32> to vector<48x128xf32>
      %99 = arith.mulf %76, %98 : vector<48x128xf32>
      %100 = vector.broadcast %97 : vector<1x128xf32> to vector<48x128xf32>
      %101 = arith.addf %99, %100 : vector<48x128xf32>
      %c1_51 = arith.constant 1 : index
      %c0_52 = arith.constant 0 : index
      %c0_53 = arith.constant 0 : index
      %102 = vector.load %arg3[%c1_51, %c0_52, %c0_53] : memref<3x128x128xf32, #tpu.memory_space<vmem>>, vector<1x128x128xf32>
      %103 = vector.shape_cast %102 : vector<1x128x128xf32> to vector<128x128xf32>
      %cst_54 = arith.constant dense<0.000000e+00> : vector<48x128xf32>
      %104 = tpu.matmul %101, %103, %cst_54 {dimension_numbers = #tpu.dot_dimension_numbers<[1], [0], [0], [1], [0, 0, 1, 1], [], []>} : vector<48x128xf32>, vector<128x128xf32>, vector<48x128xf32> -> vector<48x128xf32>
      %105 = vector.broadcast %43 : vector<1x128xf32> to vector<48x128xf32>
      %106 = arith.addf %104, %105 : vector<48x128xf32>
      %cst_55 = arith.constant 0.000000e+00 : f32
      %107 = vector.broadcast %cst_55 : f32 to vector<48x128xf32>
      %108 = arith.maximumf %106, %107 : vector<48x128xf32>
      %cst_56 = arith.constant 0.000000e+00 : f32
      %109 = vector.shape_cast %41 : vector<48x1xi1> to vector<48x1xi1>
      %110 = vector.broadcast %109 : vector<48x1xi1> to vector<48x128xi1>
      %111 = vector.broadcast %cst_56 : f32 to vector<48x128xf32>
      %112 = arith.select %110, %108, %111 : vector<48x128xi1>, vector<48x128xf32>
      %cst_57 = arith.constant dense<0.000000e+00> : vector<128xf32>
      %113 = vector.multi_reduction <add>, %112, %cst_57 [0] : vector<48x128xf32> to vector<128xf32>
      %114 = vector.shape_cast %113 : vector<128xf32> to vector<1x128xf32>
      %cst_58 = arith.constant 0.027777778 : f32
      %115 = vector.broadcast %cst_58 : f32 to vector<1x128xf32>
      %116 = arith.mulf %114, %115 : vector<1x128xf32>
      %117 = arith.mulf %112, %112 : vector<48x128xf32>
      %cst_59 = arith.constant dense<0.000000e+00> : vector<128xf32>
      %118 = vector.multi_reduction <add>, %117, %cst_59 [0] : vector<48x128xf32> to vector<128xf32>
      %119 = vector.shape_cast %118 : vector<128xf32> to vector<1x128xf32>
      %cst_60 = arith.constant 0.027777778 : f32
      %120 = vector.broadcast %cst_60 : f32 to vector<1x128xf32>
      %121 = arith.mulf %119, %120 : vector<1x128xf32>
      %122 = arith.mulf %116, %116 : vector<1x128xf32>
      %123 = arith.subf %121, %122 : vector<1x128xf32>
      %cst_61 = arith.constant 9.99999974E-6 : f32
      %124 = vector.broadcast %cst_61 : f32 to vector<1x128xf32>
      %125 = arith.addf %123, %124 : vector<1x128xf32>
      %126 = math.rsqrt %125 : vector<1x128xf32>
      %127 = arith.mulf %47, %126 : vector<1x128xf32>
      %128 = arith.mulf %116, %127 : vector<1x128xf32>
      %129 = arith.subf %50, %128 : vector<1x128xf32>
      %130 = vector.broadcast %127 : vector<1x128xf32> to vector<48x128xf32>
      %131 = arith.mulf %108, %130 : vector<48x128xf32>
      %132 = vector.broadcast %129 : vector<1x128xf32> to vector<48x128xf32>
      %133 = arith.addf %131, %132 : vector<48x128xf32>
      %c2_62 = arith.constant 2 : index
      %c0_63 = arith.constant 0 : index
      %c0_64 = arith.constant 0 : index
      %134 = vector.load %arg3[%c2_62, %c0_63, %c0_64] : memref<3x128x128xf32, #tpu.memory_space<vmem>>, vector<1x128x128xf32>
      %135 = vector.shape_cast %134 : vector<1x128x128xf32> to vector<128x128xf32>
      %cst_65 = arith.constant dense<0.000000e+00> : vector<48x128xf32>
      %136 = tpu.matmul %133, %135, %cst_65 {dimension_numbers = #tpu.dot_dimension_numbers<[1], [0], [0], [1], [0, 0, 1, 1], [], []>} : vector<48x128xf32>, vector<128x128xf32>, vector<48x128xf32> -> vector<48x128xf32>
      %137 = vector.broadcast %44 : vector<1x128xf32> to vector<48x128xf32>
      %138 = arith.addf %136, %137 : vector<48x128xf32>
      %cst_66 = arith.constant 0.000000e+00 : f32
      %139 = vector.broadcast %cst_66 : f32 to vector<48x128xf32>
      %140 = arith.maximumf %138, %139 : vector<48x128xf32>
      %141 = tpu.iota {dimensions = array<i32: 1>} : vector<48x128xi32>
      %c10_i32 = arith.constant 10 : i32
      %142 = vector.broadcast %c10_i32 : i32 to vector<48x128xi32>
      %143 = arith.cmpi slt, %141, %142 : vector<48x128xi32>
      %cst_67 = arith.constant -1.000000e+30 : f32
      %144 = vector.broadcast %cst_67 : f32 to vector<48x128xf32>
      %145 = arith.select %143, %140, %144 : vector<48x128xi1>, vector<48x128xf32>
      %cst_68 = arith.constant dense<0xFF800000> : vector<48xf32>
      %146 = vector.multi_reduction <maximumf>, %145, %cst_68 [1] : vector<48x128xf32> to vector<48xf32>
      %147 = vector.shape_cast %146 : vector<48xf32> to vector<48x1xf32>
      %148 = vector.broadcast %147 : vector<48x1xf32> to vector<48x128xf32>
      %149 = arith.subf %145, %148 : vector<48x128xf32>
      %150 = math.exp %149 : vector<48x128xf32>
      %cst_69 = arith.constant dense<0.000000e+00> : vector<48xf32>
      %151 = vector.multi_reduction <add>, %150, %cst_69 [1] : vector<48x128xf32> to vector<48xf32>
      %152 = vector.shape_cast %151 : vector<48xf32> to vector<48x1xf32>
      %153 = tpu.reciprocal %152 {approx = true} : vector<48x1xf32> -> vector<48x1xf32>
      %154 = vector.broadcast %153 : vector<48x1xf32> to vector<48x128xf32>
      %155 = arith.mulf %150, %154 : vector<48x128xf32>
      %c0_70 = arith.constant 0 : index
      %c0_71 = arith.constant 0 : index
      %156 = vector.load %arg5[%c0_70, %c0_71] : memref<48x128xf32, #tpu.memory_space<vmem>>, vector<48x128xf32>
      tpu.vector_store %arg5[%c0_70, %c0_71], %155 {strides = array<i32>} : memref<48x128xf32, #tpu.memory_space<vmem>>, vector<48x128xf32>,
    } else {
    }
    return
  }
  func.func @transform_0(%arg0: i32) -> (i32, i32) {
    %c0_i32 = arith.constant 0 : i32
    %c0_i32_0 = arith.constant 0 : i32
    return %arg0, %c0_i32 : i32, i32
  }
  func.func @transform_1(%arg0: i32) -> (i32, i32) {
    %c0_i32 = arith.constant 0 : i32
    %c0_i32_0 = arith.constant 0 : i32
    %c0_i32_1 = arith.constant 0 : i32
    return %c0_i32, %c0_i32_0 : i32, i32
  }
  func.func @transform_2(%arg0: i32) -> (i32, i32, i32) {
    %c0_i32 = arith.constant 0 : i32
    %c0_i32_0 = arith.constant 0 : i32
    %c0_i32_1 = arith.constant 0 : i32
    %c0_i32_2 = arith.constant 0 : i32
    return %c0_i32, %c0_i32_0, %c0_i32_1 : i32, i32, i32
  }
  func.func @transform_3(%arg0: i32) -> (i32, i32) {
    %c0_i32 = arith.constant 0 : i32
    %c0_i32_0 = arith.constant 0 : i32
    %c0_i32_1 = arith.constant 0 : i32
    return %c0_i32, %c0_i32_0 : i32, i32
  }
  func.func @transform_4(%arg0: i32) -> (i32, i32) {
    %c0_i32 = arith.constant 0 : i32
    %c0_i32_0 = arith.constant 0 : i32
    %c0_i32_1 = arith.constant 0 : i32
    return %c0_i32, %c0_i32_0 : i32, i32
  }
}

</mosaic_0001>

<llo_original>
// kernel: nn_layernorm_forward.1
$region0: #{nn_layernorm_forward.1}
  #allocation0 [shape = 'u32[]', space=smem, size = 0x4, offset = 0x4, fixed_abs, tag = 'smem constant byte address 0x4 - core index']
  #allocation1 [shape = 'u32[144,128]{1,0:T(1,128)}', space=vmem, size = 0x12000, scoped, tag = 'internal scratch']
  #allocation2 [shape = 'f32[48,128]{1,0:T(8,128)}', space=vmem, size = 0x6000, scoped, tag = 'scratch operand']
  #allocation3 [shape = 'f32[1,128]{1,0:T(1,128)}', space=vmem, size = 0x200, scoped, tag = 'scratch operand']
  #allocation4 [shape = 'f32[1,128]{1,0:T(1,128)}', space=vmem, size = 0x200, scoped, tag = 'scratch operand']
  %s0 = inlined_call_operand.vmem [shape: bf16[48,784], index: 0, kind: input, shape index: {}]
  %s1 = inlined_call_operand.vmem [shape: bf16[784,128], index: 1, kind: input, shape index: {}]
  %s2 = inlined_call_operand.hbm [shape: f32[3,128,128], index: 2, kind: input, shape index: {}]
  %s3 = inlined_call_operand.vmem [shape: f32[16,128], index: 3, kind: input, shape index: {}]
  %s4 = inlined_call_operand.vmem [shape: f32[48,128], index: 4, kind: output, shape index: {}]
  %s5 = sld [smem:[#allocation0]]
  $region61: #{nn_layernorm_forward.1} parent=0
    _
  %s7 = ssub.s32 1, %s5
  %s8 = scalar_select 0, %s7, %s5
  $region1: #{nn_layernorm_forward.1} parent=0
    #allocation5 [shape = 'u8[196608]{0}', space=vmem, size = 0x30000, scoped, tag = 'input window, operand 2, single buffered']
    #allocation6 [shape = 's32[2]{0}', space=sflag, size = 0x8, scoped, tag = 'scoped memory for nn_layernorm_forward.1']
    %9 = vsyncpa [#allocation6], 0
    loop: start=0, step=1, limit=5
    $region2: #{nn_layernorm_forward.1} parent=1 // loop_pre_header
      _
    $region3: #{nn_layernorm_forward.1} parent=1 // loop_header
      %s11 = sphi 0, %s15
      %p12 = scmp.ge.s32.totalorder %s11, 5
      %s21 = sphi 0, %s23
      %s24 = sphi 0, %s21
      %s25 = sphi 0, %s24
      %s41 = sphi 0, %s25
      %s45 = sphi 0, %s45
      %s47 = sphi 0, %s45
      %s48 = sphi 0, %s47
      %s62 = sphi 0, %s48
      %s66 = sphi 0, %s66
      %s68 = sphi 0, %s66
      %s69 = sphi 0, %s68
      %s83 = sphi 0, %s69
      %s87 = sphi 0, %s87
      %s89 = sphi 0, %s87
      %s90 = sphi 0, %s89
      %s104 = sphi 0, %s90
      %s108 = sphi 0, %s108
      %s110 = sphi 0, %s108
      %s111 = sphi 0, %s110
      %s125 = sphi 0, %s111
    $region4: #{nn_layernorm_forward.1} parent=1 // loop_header_branch
      %14 = sbr.rel (%p12) target = $region8
    $region5: #{nn_layernorm_forward.1} parent=1 // loop_body
      %s16 = ssub.s32 %s11, 1
      %s17 = ssub.s32 %s11, 2
      %s18 = sadd.s32 %s11, 1
      %s19 = ssub.s32 %s11, %s18
      %p20 = scmp.eq.s32.totalorder %s19, 0
      %s22 = sadd.s32 %s21, 1
      %s23 = scalar_select %p20, %s21, %s22
      %p26 = pneg %p20
      %p27 = scmp.eq.s32.totalorder %s11, 2
      %p28 = por %p26, %p27
      %p29 = scmp.ne.s32.totalorder %s21, %s24
      %p30 = scmp.eq.s32.totalorder %s11, 0
      %p31 = por %p29, %p30
      %p32 = scmp.ne.s32.totalorder %s21, %s24
      %p33 = scmp.eq.s32.totalorder %s16, 2
      %p34 = por %p32, %p33
      %p35 = scmp.ne.s32.totalorder %s24, %s25
      %p36 = scmp.eq.s32.totalorder %s16, 0
      %p37 = por %p35, %p36
      %p38 = scmp.ne.s32.totalorder %s24, %s25
      %p39 = scmp.eq.s32.totalorder %s17, 2
      %p40 = por %p38, %p39
      %p42 = scmp.ne.s32.totalorder %s25, %s41
      %p43 = scmp.eq.s32.totalorder %s17, 0
      %p44 = por %p42, %p43
      %s46 = sadd.s32 %s45, 1
      %p49 = scmp.eq.s32.totalorder %s11, 2
      %p50 = scmp.ne.s32.totalorder %s45, %s47
      %p51 = scmp.eq.s32.totalorder %s11, 0
      %p52 = por %p50, %p51
      %p53 = scmp.ne.s32.totalorder %s45, %s47
      %p54 = scmp.eq.s32.totalorder %s16, 2
      %p55 = por %p53, %p54
      %p56 = scmp.ne.s32.totalorder %s47, %s48
      %p57 = scmp.eq.s32.totalorder %s16, 0
      %p58 = por %p56, %p57
      %p59 = scmp.ne.s32.totalorder %s47, %s48
      %p60 = scmp.eq.s32.totalorder %s17, 2
      %p61 = por %p59, %p60
      %p63 = scmp.ne.s32.totalorder %s48, %s62
      %p64 = scmp.eq.s32.totalorder %s17, 0
      %p65 = por %p63, %p64
      %s67 = sadd.s32 %s66, 1
      %p70 = scmp.eq.s32.totalorder %s11, 2
      %p71 = scmp.ne.s32.totalorder %s66, %s68
      %p72 = scmp.eq.s32.totalorder %s11, 0
      %p73 = por %p71, %p72
      %p74 = scmp.ne.s32.totalorder %s66, %s68
      %p75 = scmp.eq.s32.totalorder %s16, 2
      %p76 = por %p74, %p75
      %p77 = scmp.ne.s32.totalorder %s68, %s69
      %p78 = scmp.eq.s32.totalorder %s16, 0
      %p79 = por %p77, %p78
      %p80 = scmp.ne.s32.totalorder %s68, %s69
      %p81 = scmp.eq.s32.totalorder %s17, 2
      %p82 = por %p80, %p81
      %p84 = scmp.ne.s32.totalorder %s69, %s83
      %p85 = scmp.eq.s32.totalorder %s17, 0
      %p86 = por %p84, %p85
      %s88 = sadd.s32 %s87, 1
      %p91 = scmp.eq.s32.totalorder %s11, 2
      %p92 = scmp.ne.s32.totalorder %s87, %s89
      %p93 = scmp.eq.s32.totalorder %s11, 0
      %p94 = por %p92, %p93
      %p95 = scmp.ne.s32.totalorder %s87, %s89
      %p96 = scmp.eq.s32.totalorder %s16, 2
      %p97 = por %p95, %p96
      %p98 = scmp.ne.s32.totalorder %s89, %s90
      %p99 = scmp.eq.s32.totalorder %s16, 0
      %p100 = por %p98, %p99
      %p101 = scmp.ne.s32.totalorder %s89, %s90
      %p102 = scmp.eq.s32.totalorder %s17, 2
      %p103 = por %p101, %p102
      %p105 = scmp.ne.s32.totalorder %s90, %s104
      %p106 = scmp.eq.s32.totalorder %s17, 0
      %p107 = por %p105, %p106
      %s109 = sadd.s32 %s108, 1
      %p112 = scmp.eq.s32.totalorder %s11, 2
      %p113 = scmp.ne.s32.totalorder %s108, %s110
      %p114 = scmp.eq.s32.totalorder %s11, 0
      %p115 = por %p113, %p114
      %p116 = scmp.ne.s32.totalorder %s108, %s110
      %p117 = scmp.eq.s32.totalorder %s16, 2
      %p118 = por %p116, %p117
      %p119 = scmp.ne.s32.totalorder %s110, %s111
      %p120 = scmp.eq.s32.totalorder %s16, 0
      %p121 = por %p119, %p120
      %p122 = scmp.ne.s32.totalorder %s110, %s111
      %p123 = scmp.eq.s32.totalorder %s17, 2
      %p124 = por %p122, %p123
      %p126 = scmp.ne.s32.totalorder %s111, %s125
      %p127 = scmp.eq.s32.totalorder %s17, 0
      %p128 = por %p126, %p127
      %p129 = scmp.le.s32.totalorder 1, %s11
      %p130 = scmp.lt.s32.totalorder %s11, 4
      %p131 = pnand %p129, %p130
      %p132 = pneg %p131
      // Predicated region
      $region9: #{nn_layernorm_forward.1} parent=5 // pred_check
        _
      $region10: #{nn_layernorm_forward.1} parent=5 // pred_check_branch
        %134 = sbr.rel (%p131) target = $region12
      $region11: #{nn_layernorm_forward.1} parent=5 // pred_region
        %s135 = ssub.s32 %s11, 1
        // Predicated region
        $region13: #{nn_layernorm_forward.1} parent=11 // pred_check
          %p136 = pneg %p58
        $region14: #{nn_layernorm_forward.1} parent=11 // pred_check_branch
          %138 = sbr.rel (%p136) target = $region16
        $region15: #{nn_layernorm_forward.1} parent=11 // pred_region
          _
        $region16: #{nn_layernorm_forward.1} parent=11 // pred_fallthru
          _
        // Predicated region
        $region17: #{nn_layernorm_forward.1} parent=11 // pred_check
          %p139 = pneg %p79
        $region18: #{nn_layernorm_forward.1} parent=11 // pred_check_branch
          %141 = sbr.rel (%p139) target = $region20
        $region19: #{nn_layernorm_forward.1} parent=11 // pred_region
          %s143 = ssub.s32 6144, 6144
          %144 = vsyncadd [#allocation6], %s143
          %s145 = sshll.u32 [#allocation5], 4
          %s146 = int_to_ptr.vmem [resolvable:$true] %s145
          %151 = dma.hbm_to_vmem [thread:$0]  %s2, 6144, %s146, [#allocation6], 128, 128, 8
        $region20: #{nn_layernorm_forward.1} parent=11 // pred_fallthru
          _
        // Predicated region
        $region21: #{nn_layernorm_forward.1} parent=11 // pred_check
          %p152 = pneg %p100
        $region22: #{nn_layernorm_forward.1} parent=11 // pred_check_branch
          %154 = sbr.rel (%p152) target = $region24
        $region23: #{nn_layernorm_forward.1} parent=11 // pred_region
          _
        $region24: #{nn_layernorm_forward.1} parent=11 // pred_fallthru
          _
      $region12: #{nn_layernorm_forward.1} parent=5 // pred_fallthru
        _
      %p155 = scmp.lt.s32.totalorder %s11, 3
      // Predicated region
      $region25: #{nn_layernorm_forward.1} parent=5 // pred_check
        %p156 = pneg %p155
      $region26: #{nn_layernorm_forward.1} parent=5 // pred_check_branch
        %158 = sbr.rel (%p156) target = $region28
      $region27: #{nn_layernorm_forward.1} parent=5 // pred_region
        // Predicated region
        $region29: #{nn_layernorm_forward.1} parent=27 // pred_check
          %p159 = pneg %p31
        $region30: #{nn_layernorm_forward.1} parent=27 // pred_check_branch
          %161 = sbr.rel (%p159) target = $region32
        $region31: #{nn_layernorm_forward.1} parent=27 // pred_region
          %s162 = smul.u32 2, %s11
          %p163 = scmp.lt.s32.totalorder %s162, 5
          %s164 = scalar_select %p163, %s162, 5
          %s165 = smul.addr %s164, 7
          %s166 = smul.addr %s165, 4
          %s167 = scalar_lea.vmem %s0, %s166
          %s168 = smul.u32 2, %s11
        $region32: #{nn_layernorm_forward.1} parent=27 // pred_fallthru
          _
      $region28: #{nn_layernorm_forward.1} parent=5 // pred_fallthru
        _
      %p169 = scmp.le.s32.totalorder 1, %s11
      %p170 = scmp.lt.s32.totalorder %s11, 4
      %p171 = pnand %p169, %p170
      %p172 = pneg %p171
      // Predicated region
      $region33: #{nn_layernorm_forward.1} parent=5 // pred_check
        _
      $region34: #{nn_layernorm_forward.1} parent=5 // pred_check_branch
        %174 = sbr.rel (%p171) target = $region36
      $region35: #{nn_layernorm_forward.1} parent=5 // pred_region
        %s175 = ssub.s32 %s11, 1
        // Predicated region
        $region37: #{nn_layernorm_forward.1} parent=35 // pred_check
          %p176 = pneg %p79
        $region38: #{nn_layernorm_forward.1} parent=35 // pred_check_branch
          %178 = sbr.rel (%p176) target = $region40
        $region39: #{nn_layernorm_forward.1} parent=35 // pred_region
          %179 = dma.done [#allocation6], 6144
        $region40: #{nn_layernorm_forward.1} parent=35 // pred_fallthru
          _
        %s180 = smul.u32 2, %s16
        %p181 = scmp.lt.s32.totalorder %s180, 5
        %s182 = scalar_select %p181, %s180, 5
        %s183 = smul.addr %s182, 7
        %s184 = smul.addr %s183, 4
        %s185 = scalar_lea.vmem %s0, %s184
        %p186 = pneg %p37
        %p187 = pneg %p34
        %p188 = pneg %p58
        %p189 = pneg %p55
        %p190 = pneg %p79
        %p191 = pneg %p76
        %p192 = pneg %p100
        %p193 = pneg %p97
        %p194 = pneg %p121
        %p195 = pneg %p118
        %s196 = smul.u32 2, %s16
        %p197 = scmp.lt.s32.totalorder %s196, 5
        %s198 = scalar_select %p197, %s196, 5
        %s199 = smul.addr %s198, 7
        %s200 = smul.addr %s199, 4
        %s201 = scalar_lea.vmem %s0, %s200
        %s202 = smul.u32 2, %s16
        %p204 = scmp.eq.s32.totalorder %s16, 0
        // Predicated region
        $region41: #{nn_layernorm_forward.1} parent=35 // pred_check
          %p205 = pneg %p204
        $region42: #{nn_layernorm_forward.1} parent=35 // pred_check_branch
          %207 = sbr.rel (%p205) target = $region44
        $region43: #{nn_layernorm_forward.1} parent=35 // pred_region
          %208 = vst [vmem:[#allocation3] sm:$0x1] 0.0
          %209 = vst [vmem:[#allocation4] sm:$0x1] 0.0
        $region44: #{nn_layernorm_forward.1} parent=35 // pred_fallthru
          _
        %v210 = vld [vmem:[%s3] sm:$0x1]
        %v211 = vld [vmem:[%s201] sm:$0xff]
        %v212 = vld [vmem:[%s201 + $0x8] sm:$0xff]
        %v213 = vld [vmem:[%s201 + $0x10] sm:$0xff]
        %v214 = vld [vmem:[%s201 + $0x18] sm:$0xf]
        %v215 = vld [vmem:[%s201 + $0x1c] sm:$0xff]
        %v216 = vld [vmem:[%s201 + $0x24] sm:$0xff]
        %v217 = vld [vmem:[%s201 + $0x2c] sm:$0xff]
        %v218 = vld [vmem:[%s201 + $0x34] sm:$0xf]
        %v219 = vld [vmem:[%s1] sm:$0xf]
        %v220 = vld [vmem:[%s1 + $0x4] sm:$0xf]
        %v221 = vld [vmem:[%s1 + $0x8] sm:$0xf]
        %v222 = vld [vmem:[%s1 + $0xc] sm:$0xf]
        %v223 = vld [vmem:[%s1 + $0x10] sm:$0xf]
        %v224 = vld [vmem:[%s1 + $0x14] sm:$0xf]
        %v225 = vld [vmem:[%s1 + $0x18] sm:$0xf]
        %v226 = vld [vmem:[%s1 + $0x1c] sm:$0xf]
        %v227 = vld [vmem:[%s1 + $0x20] sm:$0xf]
        %v228 = vld [vmem:[%s1 + $0x24] sm:$0xf]
        %v229 = vld [vmem:[%s1 + $0x28] sm:$0xf]
        %v230 = vld [vmem:[%s1 + $0x2c] sm:$0xf]
        %v231 = vld [vmem:[%s1 + $0x30] sm:$0xf]
        %v232 = vld [vmem:[%s1 + $0x34] sm:$0xf]
        %v233 = vld [vmem:[%s1 + $0x38] sm:$0xf]
        %v234 = vld [vmem:[%s1 + $0x3c] sm:$0xf]
        %v235 = vld [vmem:[%s1 + $0x40] sm:$0xf]
        %v236 = vld [vmem:[%s1 + $0x44] sm:$0xf]
        %v237 = vld [vmem:[%s1 + $0x48] sm:$0xf]
        %v238 = vld [vmem:[%s1 + $0x4c] sm:$0xf]
        %v239 = vld [vmem:[%s1 + $0x50] sm:$0xf]
        %v240 = vld [vmem:[%s1 + $0x54] sm:$0xf]
        %v241 = vld [vmem:[%s1 + $0x58] sm:$0xf]
        %v242 = vld [vmem:[%s1 + $0x5c] sm:$0xf]
        %v243 = vld [vmem:[%s1 + $0x60] sm:$0xf]
        %v244 = vld [vmem:[%s1 + $0x64] sm:$0xf]
        %v245 = vld [vmem:[%s1 + $0x68] sm:$0xf]
        %v246 = vld [vmem:[%s1 + $0x6c] sm:$0xf]
        %v247 = vld [vmem:[%s1 + $0x70] sm:$0xf]
        %v248 = vld [vmem:[%s1 + $0x74] sm:$0xf]
        %v249 = vld [vmem:[%s1 + $0x78] sm:$0xf]
        %v250 = vld [vmem:[%s1 + $0x7c] sm:$0xf]
        %v251 = vld [vmem:[%s1 + $0x80] sm:$0xf]
        %v252 = vld [vmem:[%s1 + $0x84] sm:$0xf]
        %v253 = vld [vmem:[%s1 + $0x88] sm:$0xf]
        %v254 = vld [vmem:[%s1 + $0x8c] sm:$0xf]
        %v255 = vld [vmem:[%s1 + $0x90] sm:$0xf]
        %v256 = vld [vmem:[%s1 + $0x94] sm:$0xf]
        %v257 = vld [vmem:[%s1 + $0x98] sm:$0xf]
        %v258 = vld [vmem:[%s1 + $0x9c] sm:$0xf]
        %v259 = vld [vmem:[%s1 + $0xa0] sm:$0xf]
        %v260 = vld [vmem:[%s1 + $0xa4] sm:$0xf]
        %v261 = vld [vmem:[%s1 + $0xa8] sm:$0xf]
        %v262 = vld [vmem:[%s1 + $0xac] sm:$0xf]
        %v263 = vld [vmem:[%s1 + $0xb0] sm:$0xf]
        %v264 = vld [vmem:[%s1 + $0xb4] sm:$0xf]
        %v265 = vld [vmem:[%s1 + $0xb8] sm:$0xf]
        %v266 = vld [vmem:[%s1 + $0xbc] sm:$0xf]
        %v267 = vld [vmem:[%s1 + $0xc0] sm:$0xf]
        %v268 = vld [vmem:[%s1 + $0xc4] sm:$0xf]
        %v269 = vld [vmem:[%s1 + $0xc8] sm:$0xf]
        %v270 = vld [vmem:[%s1 + $0xcc] sm:$0xf]
        %v271 = vld [vmem:[%s1 + $0xd0] sm:$0xf]
        %v272 = vld [vmem:[%s1 + $0xd4] sm:$0xf]
        %v273 = vld [vmem:[%s1 + $0xd8] sm:$0xf]
        %v274 = vld [vmem:[%s1 + $0xdc] sm:$0xf]
        %v275 = vld [vmem:[%s1 + $0xe0] sm:$0xf]
        %v276 = vld [vmem:[%s1 + $0xe4] sm:$0xf]
        %v277 = vld [vmem:[%s1 + $0xe8] sm:$0xf]
        %v278 = vld [vmem:[%s1 + $0xec] sm:$0xf]
        %v279 = vld [vmem:[%s1 + $0xf0] sm:$0xf]
        %v280 = vld [vmem:[%s1 + $0xf4] sm:$0xf]
        %v281 = vld [vmem:[%s1 + $0xf8] sm:$0xf]
        %v282 = vld [vmem:[%s1 + $0xfc] sm:$0xf]
        %v283 = vld [vmem:[%s1 + $0x100] sm:$0xf]
        %v284 = vld [vmem:[%s1 + $0x104] sm:$0xf]
        %v285 = vld [vmem:[%s1 + $0x108] sm:$0xf]
        %v286 = vld [vmem:[%s1 + $0x10c] sm:$0xf]
        %v287 = vld [vmem:[%s1 + $0x110] sm:$0xf]
        %v288 = vld [vmem:[%s1 + $0x114] sm:$0xf]
        %v289 = vld [vmem:[%s1 + $0x118] sm:$0xf]
        %v290 = vld [vmem:[%s1 + $0x11c] sm:$0xf]
        %v291 = vld [vmem:[%s1 + $0x120] sm:$0xf]
        %v292 = vld [vmem:[%s1 + $0x124] sm:$0xf]
        %v293 = vld [vmem:[%s1 + $0x128] sm:$0xf]
        %v294 = vld [vmem:[%s1 + $0x12c] sm:$0xf]
        %v295 = vld [vmem:[%s1 + $0x130] sm:$0xf]
        %v296 = vld [vmem:[%s1 + $0x134] sm:$0xf]
        %v297 = vld [vmem:[%s1 + $0x138] sm:$0xf]
        %v298 = vld [vmem:[%s1 + $0x13c] sm:$0xf]
        %v299 = vld [vmem:[%s1 + $0x140] sm:$0xf]
        %v300 = vld [vmem:[%s1 + $0x144] sm:$0xf]
        %v301 = vld [vmem:[%s1 + $0x148] sm:$0xf]
        %v302 = vld [vmem:[%s1 + $0x14c] sm:$0xf]
        %v303 = vld [vmem:[%s1 + $0x150] sm:$0xf]
        %v304 = vld [vmem:[%s1 + $0x154] sm:$0xf]
        %v305 = vld [vmem:[%s1 + $0x158] sm:$0xf]
        %v306 = vld [vmem:[%s1 + $0x15c] sm:$0xf]
        %v307 = vld [vmem:[%s1 + $0x160] sm:$0xf]
        %v308 = vld [vmem:[%s1 + $0x164] sm:$0xf]
        %v309 = vld [vmem:[%s1 + $0x168] sm:$0xf]
        %v310 = vld [vmem:[%s1 + $0x16c] sm:$0xf]
        %v311 = vld [vmem:[%s1 + $0x170] sm:$0xf]
        %v312 = vld [vmem:[%s1 + $0x174] sm:$0xf]
        %v313 = vld [vmem:[%s1 + $0x178] sm:$0xf]
        %v314 = vld [vmem:[%s1 + $0x17c] sm:$0xf]
        %v315 = vld [vmem:[%s1 + $0x180] sm:$0xf]
        %v316 = vld [vmem:[%s1 + $0x184] sm:$0xf]
        %v317 = vlaneseq
        %v318 = vshrl.u32 %v317, 7
        %v319 = vsub.s32 0, %v318
        %v320 = vrot.slane %v210, %v319
        %v329 = vunpack.c.l.b16 %v211
        %v330 = vunpack.c.h.b16 %v211
        %v331 = vunpack.c.l.b16 %v212
        %v332 = vunpack.c.h.b16 %v212
        %v333 = vunpack.c.l.b16 %v213
        %v334 = vunpack.c.h.b16 %v213
        %v335 = vunpack.c.l.b16 %v214
        %v336 = vunpack.c.l.b16 %v215
        %v337 = vunpack.c.h.b16 %v215
        %v338 = vunpack.c.l.b16 %v216
        %v339 = vunpack.c.h.b16 %v216
        %v340 = vunpack.c.l.b16 %v217
        %v341 = vunpack.c.h.b16 %v217
        %v342 = vunpack.c.l.b16 %v218
        %v343 = vpack.c.b16 %v336, %v329
        %v344 = vpack.c.b16 %v337, %v330
        %v345 = vpack.c.b16 %v338, %v331
        %v346 = vpack.c.b16 %v339, %v332
        %v347 = vpack.c.b16 %v340, %v333
        %v348 = vpack.c.b16 %v341, %v334
        %v349 = vpack.c.b16 %v342, %v335
        %v454 = vunpack.c.l.b16 %v219
        %v455 = vunpack.c.l.b16 %v220
        %v456 = vunpack.c.l.b16 %v221
        %v457 = vunpack.c.l.b16 %v222
        %v458 = vunpack.c.l.b16 %v223
        %v459 = vunpack.c.l.b16 %v224
        %v460 = vunpack.c.l.b16 %v225
        %v461 = vunpack.c.l.b16 %v226
        %v462 = vunpack.c.l.b16 %v227
        %v463 = vunpack.c.l.b16 %v228
        %v464 = vunpack.c.l.b16 %v229
        %v465 = vunpack.c.l.b16 %v230
        %v466 = vunpack.c.l.b16 %v231
        %v467 = vunpack.c.l.b16 %v232
        %v468 = vunpack.c.l.b16 %v233
        %v469 = vunpack.c.l.b16 %v234
        %v470 = vunpack.c.l.b16 %v235
        %v471 = vunpack.c.l.b16 %v236
        %v472 = vunpack.c.l.b16 %v237
        %v473 = vunpack.c.l.b16 %v238
        %v474 = vunpack.c.l.b16 %v239
        %v475 = vunpack.c.l.b16 %v240
        %v476 = vunpack.c.l.b16 %v241
        %v477 = vunpack.c.l.b16 %v242
        %v478 = vunpack.c.l.b16 %v243
        %v479 = vunpack.c.l.b16 %v244
        %v480 = vunpack.c.l.b16 %v245
        %v481 = vunpack.c.l.b16 %v246
        %v482 = vunpack.c.l.b16 %v247
        %v483 = vunpack.c.l.b16 %v248
        %v484 = vunpack.c.l.b16 %v249
        %v485 = vunpack.c.l.b16 %v250
        %v486 = vunpack.c.l.b16 %v251
        %v487 = vunpack.c.l.b16 %v252
        %v488 = vunpack.c.l.b16 %v253
        %v489 = vunpack.c.l.b16 %v254
        %v490 = vunpack.c.l.b16 %v255
        %v491 = vunpack.c.l.b16 %v256
        %v492 = vunpack.c.l.b16 %v257
        %v493 = vunpack.c.l.b16 %v258
        %v494 = vunpack.c.l.b16 %v259
        %v495 = vunpack.c.l.b16 %v260
        %v496 = vunpack.c.l.b16 %v261
        %v497 = vunpack.c.l.b16 %v262
        %v498 = vunpack.c.l.b16 %v263
        %v499 = vunpack.c.l.b16 %v264
        %v500 = vunpack.c.l.b16 %v265
        %v501 = vunpack.c.l.b16 %v266
        %v502 = vunpack.c.l.b16 %v267
        %v503 = vunpack.c.l.b16 %v268
        %v504 = vunpack.c.l.b16 %v269
        %v505 = vunpack.c.l.b16 %v270
        %v506 = vunpack.c.l.b16 %v271
        %v507 = vunpack.c.l.b16 %v272
        %v508 = vunpack.c.l.b16 %v273
        %v509 = vunpack.c.l.b16 %v274
        %v510 = vunpack.c.l.b16 %v275
        %v511 = vunpack.c.l.b16 %v276
        %v512 = vunpack.c.l.b16 %v277
        %v513 = vunpack.c.l.b16 %v278
        %v514 = vunpack.c.l.b16 %v279
        %v515 = vunpack.c.l.b16 %v280
        %v516 = vunpack.c.l.b16 %v281
        %v517 = vunpack.c.l.b16 %v282
        %v518 = vunpack.c.l.b16 %v283
        %v519 = vunpack.c.l.b16 %v284
        %v520 = vunpack.c.l.b16 %v285
        %v521 = vunpack.c.l.b16 %v286
        %v522 = vunpack.c.l.b16 %v287
        %v523 = vunpack.c.l.b16 %v288
        %v524 = vunpack.c.l.b16 %v289
        %v525 = vunpack.c.l.b16 %v290
        %v526 = vunpack.c.l.b16 %v291
        %v527 = vunpack.c.l.b16 %v292
        %v528 = vunpack.c.l.b16 %v293
        %v529 = vunpack.c.l.b16 %v294
        %v530 = vunpack.c.l.b16 %v295
        %v531 = vunpack.c.l.b16 %v296
        %v532 = vunpack.c.l.b16 %v297
        %v533 = vunpack.c.l.b16 %v298
        %v534 = vunpack.c.l.b16 %v299
        %v535 = vunpack.c.l.b16 %v300
        %v536 = vunpack.c.l.b16 %v301
        %v537 = vunpack.c.l.b16 %v302
        %v538 = vunpack.c.l.b16 %v303
        %v539 = vunpack.c.l.b16 %v304
        %v540 = vunpack.c.l.b16 %v305
        %v541 = vunpack.c.l.b16 %v306
        %v542 = vunpack.c.l.b16 %v307
        %v543 = vunpack.c.l.b16 %v308
        %v544 = vunpack.c.l.b16 %v309
        %v545 = vunpack.c.l.b16 %v310
        %v546 = vunpack.c.l.b16 %v311
        %v547 = vunpack.c.l.b16 %v312
        %v548 = vunpack.c.l.b16 %v313
        %v549 = vunpack.c.l.b16 %v314
        %v550 = vunpack.c.l.b16 %v315
        %v551 = vunpack.c.l.b16 %v316
        %v552 = vpack.c.b16 %v455, %v454
        %v553 = vpack.c.b16 %v457, %v456
        %v554 = vpack.c.b16 %v459, %v458
        %v555 = vpack.c.b16 %v461, %v460
        %v556 = vpack.c.b16 %v463, %v462
        %v557 = vpack.c.b16 %v465, %v464
        %v558 = vpack.c.b16 %v467, %v466
        %v559 = vpack.c.b16 %v469, %v468
        %v560 = vpack.c.b16 %v471, %v470
        %v561 = vpack.c.b16 %v473, %v472
        %v562 = vpack.c.b16 %v475, %v474
        %v563 = vpack.c.b16 %v477, %v476
        %v564 = vpack.c.b16 %v479, %v478
        %v565 = vpack.c.b16 %v481, %v480
        %v566 = vpack.c.b16 %v483, %v482
        %v567 = vpack.c.b16 %v485, %v484
        %v568 = vpack.c.b16 %v487, %v486
        %v569 = vpack.c.b16 %v489, %v488
        %v570 = vpack.c.b16 %v491, %v490
        %v571 = vpack.c.b16 %v493, %v492
        %v572 = vpack.c.b16 %v495, %v494
        %v573 = vpack.c.b16 %v497, %v496
        %v574 = vpack.c.b16 %v499, %v498
        %v575 = vpack.c.b16 %v501, %v500
        %v576 = vpack.c.b16 %v503, %v502
        %v577 = vpack.c.b16 %v505, %v504
        %v578 = vpack.c.b16 %v507, %v506
        %v579 = vpack.c.b16 %v509, %v508
        %v580 = vpack.c.b16 %v511, %v510
        %v581 = vpack.c.b16 %v513, %v512
        %v582 = vpack.c.b16 %v515, %v514
        %v583 = vpack.c.b16 %v517, %v516
        %v584 = vpack.c.b16 %v519, %v518
        %v585 = vpack.c.b16 %v521, %v520
        %v586 = vpack.c.b16 %v523, %v522
        %v587 = vpack.c.b16 %v525, %v524
        %v588 = vpack.c.b16 %v527, %v526
        %v589 = vpack.c.b16 %v529, %v528
        %v590 = vpack.c.b16 %v531, %v530
        %v591 = vpack.c.b16 %v533, %v532
        %v592 = vpack.c.b16 %v535, %v534
        %v593 = vpack.c.b16 %v537, %v536
        %v594 = vpack.c.b16 %v539, %v538
        %v595 = vpack.c.b16 %v541, %v540
        %v596 = vpack.c.b16 %v543, %v542
        %v597 = vpack.c.b16 %v545, %v544
        %v598 = vpack.c.b16 %v547, %v546
        %v599 = vpack.c.b16 %v549, %v548
        %v600 = vpack.c.b16 %v551, %v550
        %vm650 = vcmask 130048
        %v652 = vsel %vm650, %v349, 0
        %654 = vmatprep.subr.bf16.mxu0 0
        %655 = vmatpush1.bf16.msra.mxu0 %v559
        %656 = vmatprep.subr.bf16.mxu0 0
        %657 = vmatpush1.bf16.msra.mxu0 %v558
        %658 = vmatprep.subr.bf16.mxu0 0
        %659 = vmatpush1.bf16.msra.mxu0 %v557
        %660 = vmatprep.subr.bf16.mxu0 0
        %661 = vmatpush1.bf16.msra.mxu0 %v556
        %662 = vmatprep.subr.bf16.mxu0 0
        %663 = vmatpush1.bf16.msra.mxu0 %v555
        %664 = vmatprep.subr.bf16.mxu0 0
        %665 = vmatpush1.bf16.msra.mxu0 %v554
        %666 = vmatprep.subr.bf16.mxu0 0
        %667 = vmatpush1.bf16.msra.mxu0 %v553
        %668 = vmatprep.subr.bf16.mxu0 0
        %669 = vmatpush1.bf16.msra.mxu0 %v552
        %670 = vmatprep.subr.bf16.mxu0 0
        %671 = vmatpush2.bf16.msra.mxu0 %v567
        %672 = vmatprep.subr.bf16.mxu0 0
        %673 = vmatpush2.bf16.msra.mxu0 %v566
        %674 = vmatprep.subr.bf16.mxu0 0
        %675 = vmatpush2.bf16.msra.mxu0 %v565
        %676 = vmatprep.subr.bf16.mxu0 0
        %677 = vmatpush2.bf16.msra.mxu0 %v564
        %678 = vmatprep.subr.bf16.mxu0 0
        %679 = vmatpush2.bf16.msra.mxu0 %v563
        %680 = vmatprep.subr.bf16.mxu0 0
        %681 = vmatpush2.bf16.msra.mxu0 %v562
        %682 = vmatprep.subr.bf16.mxu0 0
        %683 = vmatpush2.bf16.msra.mxu0 %v561
        %684 = vmatprep.subr.bf16.mxu0 0
        %685 = vmatpush2.bf16.msra.mxu0 %v560
        %686 = vmatprep.mubr.bf16.mxu0 %v344
        %687 = vmatmul.mubr.bf16.gmra.mxu0 %v343
        %v688 = vpop.f32.mrf.mxu0
        %v689 = vadd.f32 %v320, %v688
        %v690 = vpop.f32.mrf.mxu0
        %v691 = vpop.f32.mrf.mxu0
        %v692 = vadd.f32 %v320, %v691
        %v693 = vpop.f32.mrf.mxu0
        %694 = vdwg.mxu0
        %695 = vmatprep.subr.bf16.mxu0 0
        %696 = vmatpush1.bf16.msra.mxu0 %v575
        %697 = vmatprep.subr.bf16.mxu0 0
        %698 = vmatpush1.bf16.msra.mxu0 %v574
        %699 = vmatprep.subr.bf16.mxu0 0
        %700 = vmatpush1.bf16.msra.mxu0 %v573
        %701 = vmatprep.subr.bf16.mxu0 0
        %702 = vmatpush1.bf16.msra.mxu0 %v572
        %703 = vmatprep.subr.bf16.mxu0 0
        %704 = vmatpush1.bf16.msra.mxu0 %v571
        %705 = vmatprep.subr.bf16.mxu0 0
        %706 = vmatpush1.bf16.msra.mxu0 %v570
        %707 = vmatprep.subr.bf16.mxu0 0
        %708 = vmatpush1.bf16.msra.mxu0 %v569
        %709 = vmatprep.subr.bf16.mxu0 0
        %710 = vmatpush1.bf16.msra.mxu0 %v568
        %711 = vmatprep.subr.bf16.mxu0 0
        %712 = vmatpush2.bf16.msra.mxu0 %v583
        %713 = vmatprep.subr.bf16.mxu0 0
        %714 = vmatpush2.bf16.msra.mxu0 %v582
        %715 = vmatprep.subr.bf16.mxu0 0
        %716 = vmatpush2.bf16.msra.mxu0 %v581
        %717 = vmatprep.subr.bf16.mxu0 0
        %718 = vmatpush2.bf16.msra.mxu0 %v580
        %719 = vmatprep.subr.bf16.mxu0 0
        %720 = vmatpush2.bf16.msra.mxu0 %v579
        %721 = vmatprep.subr.bf16.mxu0 0
        %722 = vmatpush2.bf16.msra.mxu0 %v578
        %723 = vmatprep.subr.bf16.mxu0 0
        %724 = vmatpush2.bf16.msra.mxu0 %v577
        %725 = vmatprep.subr.bf16.mxu0 0
        %726 = vmatpush2.bf16.msra.mxu0 %v576
        %727 = vmatprep.mubr.bf16.mxu0 %v346
        %728 = vmatmul.mubr.bf16.gmra.mxu0 %v345
        %v729 = vpop.f32.mrf.mxu0
        %v730 = vadd.f32 %v689, %v729
        %v731 = vpop.f32.mrf.mxu0
        %v732 = vpop.f32.mrf.mxu0
        %v733 = vadd.f32 %v692, %v732
        %v734 = vpop.f32.mrf.mxu0
        %735 = vdwg.mxu0
        %736 = vmatprep.subr.bf16.mxu0 0
        %737 = vmatpush1.bf16.msra.mxu0 %v591
        %738 = vmatprep.subr.bf16.mxu0 0
        %739 = vmatpush1.bf16.msra.mxu0 %v590
        %740 = vmatprep.subr.bf16.mxu0 0
        %741 = vmatpush1.bf16.msra.mxu0 %v589
        %742 = vmatprep.subr.bf16.mxu0 0
        %743 = vmatpush1.bf16.msra.mxu0 %v588
        %744 = vmatprep.subr.bf16.mxu0 0
        %745 = vmatpush1.bf16.msra.mxu0 %v587
        %746 = vmatprep.subr.bf16.mxu0 0
        %747 = vmatpush1.bf16.msra.mxu0 %v586
        %748 = vmatprep.subr.bf16.mxu0 0
        %749 = vmatpush1.bf16.msra.mxu0 %v585
        %750 = vmatprep.subr.bf16.mxu0 0
        %751 = vmatpush1.bf16.msra.mxu0 %v584
        %752 = vmatprep.subr.bf16.mxu0 0
        %753 = vmatpush2.bf16.msra.mxu0 %v599
        %754 = vmatprep.subr.bf16.mxu0 0
        %755 = vmatpush2.bf16.msra.mxu0 %v598
        %756 = vmatprep.subr.bf16.mxu0 0
        %757 = vmatpush2.bf16.msra.mxu0 %v597
        %758 = vmatprep.subr.bf16.mxu0 0
        %759 = vmatpush2.bf16.msra.mxu0 %v596
        %760 = vmatprep.subr.bf16.mxu0 0
        %761 = vmatpush2.bf16.msra.mxu0 %v595
        %762 = vmatprep.subr.bf16.mxu0 0
        %763 = vmatpush2.bf16.msra.mxu0 %v594
        %764 = vmatprep.subr.bf16.mxu0 0
        %765 = vmatpush2.bf16.msra.mxu0 %v593
        %766 = vmatprep.subr.bf16.mxu0 0
        %767 = vmatpush2.bf16.msra.mxu0 %v592
        %768 = vmatprep.mubr.bf16.mxu0 %v348
        %769 = vmatmul.mubr.bf16.gmra.mxu0 %v347
        %v770 = vpop.f32.mrf.mxu0
        %v771 = vadd.f32 %v730, %v770
        %v772 = vpop.f32.mrf.mxu0
        %v773 = vpop.f32.mrf.mxu0
        %v774 = vadd.f32 %v733, %v773
        %v775 = vpop.f32.mrf.mxu0
        %776 = vdwg.mxu0
        %777 = vmatprep.subr.bf16.mxu0 0
        %778 = vmatpush1.bf16.msra.mxu0 0
        %779 = vmatprep.subr.bf16.mxu0 0
        %780 = vmatpush1.bf16.msra.mxu0 0
        %781 = vmatprep.subr.bf16.mxu0 0
        %782 = vmatpush1.bf16.msra.mxu0 0
        %783 = vmatprep.subr.bf16.mxu0 0
        %784 = vmatpush1.bf16.msra.mxu0 0
        %785 = vmatprep.subr.bf16.mxu0 0
        %786 = vmatpush1.bf16.msra.mxu0 0
        %787 = vmatprep.subr.bf16.mxu0 0
        %788 = vmatpush1.bf16.msra.mxu0 0
        %789 = vmatprep.subr.bf16.mxu0 0
        %790 = vmatpush1.bf16.msra.mxu0 0
        %791 = vmatprep.subr.bf16.mxu0 0
        %792 = vmatpush1.bf16.msra.mxu0 %v600
        %793 = vmatprep.subr.bf16.mxu0 0
        %794 = vmatpush2.bf16.msra.mxu0 0
        %795 = vmatprep.subr.bf16.mxu0 0
        %796 = vmatpush2.bf16.msra.mxu0 0
        %797 = vmatprep.subr.bf16.mxu0 0
        %798 = vmatpush2.bf16.msra.mxu0 0
        %799 = vmatprep.subr.bf16.mxu0 0
        %800 = vmatpush2.bf16.msra.mxu0 0
        %801 = vmatprep.subr.bf16.mxu0 0
        %802 = vmatpush2.bf16.msra.mxu0 0
        %803 = vmatprep.subr.bf16.mxu0 0
        %804 = vmatpush2.bf16.msra.mxu0 0
        %805 = vmatprep.subr.bf16.mxu0 0
        %806 = vmatpush2.bf16.msra.mxu0 0
        %807 = vmatprep.subr.bf16.mxu0 0
        %808 = vmatpush2.bf16.msra.mxu0 0
        %809 = vmatprep.mubr.bf16.mxu0 0
        %810 = vmatmul.mubr.bf16.gmra.mxu0 %v652
        %v811 = vpop.f32.mrf.mxu0
        %v812 = vadd.f32 %v771, %v811
        %v813 = vpop.f32.mrf.mxu0
        %v814 = vpop.f32.mrf.mxu0
        %v815 = vadd.f32 %v774, %v814
        %v816 = vpop.f32.mrf.mxu0
        %817 = vdwg.mxu0
        %v818 = vmax.f32 %v812, 0.0
        %v819 = vmax.f32 %v815, 0.0
        %s820 = smul.u32 %s16, 16
        %v821 = vlaneseq
        %v822 = vshrl.u32 %v821, 7
        %v823 = vadd.s32 %v822, 8
        %v824 = vstv %s820
        %v825 = vadd.s32 %v824, %v822
        %v826 = vadd.s32 %v824, %v823
        %vm827 = vcmp.lt.s32.totalorder %v825, 36
        %vm828 = vcmp.lt.s32.totalorder %v826, 36
        %v829 = vsel %vm827, 1, 0
        %v830 = vsel %vm828, 1, 0
        %vm831 = vcmp.eq.s32.totalorder %v829, 1
        %vm832 = vcmp.eq.s32.totalorder %v830, 1
        %v833 = vsel %vm831, %v818, 0.0
        %v834 = vsel %vm832, %v819, 0.0
        %v835 = vld [vmem:[#allocation3] sm:$0x1]
        %v836 = vadd.f32 %v833, %v834
        %v837 = vrot.slane %v836, 4
        %v838 = vadd.f32 %v836, %v837
        %v839 = vrot.slane %v838, 2
        %v840 = vadd.f32 %v838, %v839
        %v841 = vrot.slane %v840, 1
        %v842 = vadd.f32 %v840, %v841
        %v843 = vadd.f32 %v835, %v842
        %844 = vst [vmem:[#allocation3] sm:$0x1] %v843
        %v845 = vld [vmem:[#allocation4] sm:$0x1]
        %v846 = vmul.f32 %v833, %v833
        %v847 = vmul.f32 %v834, %v834
        %v848 = vadd.f32 %v846, %v847
        %v849 = vrot.slane %v848, 4
        %v850 = vadd.f32 %v848, %v849
        %v851 = vrot.slane %v850, 2
        %v852 = vadd.f32 %v850, %v851
        %v853 = vrot.slane %v852, 1
        %v854 = vadd.f32 %v852, %v853
        %v855 = vadd.f32 %v845, %v854
        %856 = vst [vmem:[#allocation4] sm:$0x1] %v855
        %s857 = scalar_lea.vmem [#allocation2], %s820
        %858 = vst [vmem:[%s857] sm:$0xff] %v818
        %859 = vst [vmem:[%s857 + $0x8] sm:$0xff] %v819
        %p860 = scmp.eq.s32.totalorder %s16, 2
        // Predicated region
        $region45: #{nn_layernorm_forward.1} parent=35 // pred_check
          %p861 = pneg %p860
        $region46: #{nn_layernorm_forward.1} parent=35 // pred_check_branch
          %863 = sbr.rel (%p861) target = $region48
        $region47: #{nn_layernorm_forward.1} parent=35 // pred_region
          %v864 = vadd.s32 %v822, 16
          %v865 = vadd.s32 %v822, 24
          %v866 = vadd.s32 %v822, 32
          %v867 = vadd.s32 %v822, 40
          %vm868 = vcmp.lt.s32.totalorder %v822, 36
          %vm869 = vcmp.lt.s32.totalorder %v823, 36
          %vm870 = vcmp.lt.s32.totalorder %v864, 36
          %vm871 = vcmp.lt.s32.totalorder %v865, 36
          %vm872 = vcmp.lt.s32.totalorder %v866, 36
          %vm873 = vcmp.lt.s32.totalorder %v867, 36
          %v874 = vld [vmem:[%s3 + $0x1] sm:$0x1]
          %v875 = vld [vmem:[%s3 + $0x2] sm:$0x1]
          %v876 = vld [vmem:[%s3 + $0x3] sm:$0x1]
          %v877 = vld [vmem:[%s3 + $0x4] sm:$0x1]
          %v878 = vld [vmem:[%s3 + $0x5] sm:$0x1]
          %v879 = vld [vmem:[%s3 + $0x6] sm:$0x1]
          %v880 = vld [vmem:[%s3 + $0x7] sm:$0x1]
          %v881 = vld [vmem:[%s3 + $0x8] sm:$0x1]
          %v882 = vld [vmem:[%s3 + $0x9] sm:$0x1]
          %v883 = vld [vmem:[#allocation2] sm:$0xff]
          %v884 = vld [vmem:[#allocation2 + $0x8] sm:$0xff]
          %v885 = vld [vmem:[#allocation2 + $0x10] sm:$0xff]
          %v886 = vld [vmem:[#allocation2 + $0x18] sm:$0xff]
          %v887 = vld [vmem:[#allocation2 + $0x20] sm:$0xff]
          %v888 = vld [vmem:[#allocation2 + $0x28] sm:$0xff]
          %v889 = vld [vmem:[#allocation3] sm:$0x1]
          %v890 = vmul.f32 %v889, 0.027777778
          %v891 = vld [vmem:[#allocation4] sm:$0x1]
          %v892 = vmul.f32 %v891, 0.027777778
          %v893 = vmul.f32 %v890, %v890
          %v894 = vsub.f32 %v892, %v893
          %v895 = vadd.f32 %v894, 1e-05
          %v896 = vrsqrt.pop %v895
          %v897 = vmul.f32 %v877, %v896
          %v898 = vmul.f32 %v890, %v897
          %v899 = vsub.f32 %v880, %v898
          %v900 = vlaneseq
          %v901 = vshrl.u32 %v900, 7
          %v902 = vsub.s32 0, %v901
          %v903 = vrot.slane %v897, %v902
          %v904 = vmul.f32 %v883, %v903
          %v905 = vmul.f32 %v884, %v903
          %v906 = vmul.f32 %v885, %v903
          %v907 = vmul.f32 %v886, %v903
          %v908 = vmul.f32 %v887, %v903
          %v909 = vmul.f32 %v888, %v903
          %v910 = vlaneseq
          %v911 = vshrl.u32 %v910, 7
          %v912 = vsub.s32 0, %v911
          %v913 = vrot.slane %v899, %v912
          %v914 = vadd.f32 %v904, %v913
          %v915 = vadd.f32 %v905, %v913
          %v916 = vadd.f32 %v906, %v913
          %v917 = vadd.f32 %v907, %v913
          %v918 = vadd.f32 %v908, %v913
          %v919 = vadd.f32 %v909, %v913
          %v920 = vld [vmem:[#allocation5] sm:$0xff]
          %v921 = vld [vmem:[#allocation5 + $0x8] sm:$0xff]
          %v922 = vld [vmem:[#allocation5 + $0x10] sm:$0xff]
          %v923 = vld [vmem:[#allocation5 + $0x18] sm:$0xff]
          %v924 = vld [vmem:[#allocation5 + $0x20] sm:$0xff]
          %v925 = vld [vmem:[#allocation5 + $0x28] sm:$0xff]
          %v926 = vld [vmem:[#allocation5 + $0x30] sm:$0xff]
          %v927 = vld [vmem:[#allocation5 + $0x38] sm:$0xff]
          %v928 = vld [vmem:[#allocation5 + $0x40] sm:$0xff]
          %v929 = vld [vmem:[#allocation5 + $0x48] sm:$0xff]
          %v930 = vld [vmem:[#allocation5 + $0x50] sm:$0xff]
          %v931 = vld [vmem:[#allocation5 + $0x58] sm:$0xff]
          %v932 = vld [vmem:[#allocation5 + $0x60] sm:$0xff]
          %v933 = vld [vmem:[#allocation5 + $0x68] sm:$0xff]
          %v934 = vld [vmem:[#allocation5 + $0x70] sm:$0xff]
          %v935 = vld [vmem:[#allocation5 + $0x78] sm:$0xff]
          %v936 = vlaneseq
          %v937 = vshrl.u32 %v936, 7
          %v938 = vsub.s32 0, %v937
          %v939 = vrot.slane %v874, %v938
          %940 = vmatprep.subr.mxu0 0.0
          %941 = vmatpush1.msra.mxu0 %v935
          %942 = vmatprep.subr.mxu0 0.0
          %943 = vmatpush1.msra.mxu0 %v934
          %944 = vmatprep.subr.mxu0 0.0
          %945 = vmatpush1.msra.mxu0 %v933
          %946 = vmatprep.subr.mxu0 0.0
          %947 = vmatpush1.msra.mxu0 %v932
          %948 = vmatprep.subr.mxu0 0.0
          %949 = vmatpush1.msra.mxu0 %v931
          %950 = vmatprep.subr.mxu0 0.0
          %951 = vmatpush1.msra.mxu0 %v930
          %952 = vmatprep.subr.mxu0 0.0
          %953 = vmatpush1.msra.mxu0 %v929
          %954 = vmatprep.subr.mxu0 0.0
          %955 = vmatpush1.msra.mxu0 %v928
          %956 = vmatprep.subr.mxu0 0.0
          %957 = vmatpush1.msra.mxu0 %v927
          %958 = vmatprep.subr.mxu0 0.0
          %959 = vmatpush1.msra.mxu0 %v926
          %960 = vmatprep.subr.mxu0 0.0
          %961 = vmatpush1.msra.mxu0 %v925
          %962 = vmatprep.subr.mxu0 0.0
          %963 = vmatpush1.msra.mxu0 %v924
          %964 = vmatprep.subr.mxu0 0.0
          %965 = vmatpush1.msra.mxu0 %v923
          %966 = vmatprep.subr.mxu0 0.0
          %967 = vmatpush1.msra.mxu0 %v922
          %968 = vmatprep.subr.mxu0 0.0
          %969 = vmatpush1.msra.mxu0 %v921
          %970 = vmatprep.subr.mxu0 0.0
          %971 = vmatpush1.msra.mxu0 %v920
          %972 = vmatprep.subr.mxu0 0.0
          %973 = vmatpush2.msra.mxu0 0.0
          %974 = vmatprep.subr.mxu0 0.0
          %975 = vmatpush2.msra.mxu0 0.0
          %976 = vmatprep.subr.mxu0 0.0
          %977 = vmatpush2.msra.mxu0 0.0
          %978 = vmatprep.subr.mxu0 0.0
          %979 = vmatpush2.msra.mxu0 0.0
          %980 = vmatprep.subr.mxu0 0.0
          %981 = vmatpush2.msra.mxu0 0.0
          %982 = vmatprep.subr.mxu0 0.0
          %983 = vmatpush2.msra.mxu0 0.0
          %984 = vmatprep.subr.mxu0 0.0
          %985 = vmatpush2.msra.mxu0 0.0
          %986 = vmatprep.subr.mxu0 0.0
          %987 = vmatpush2.msra.mxu0 0.0
          %988 = vmatprep.subr.mxu0 0.0
          %989 = vmatpush2.msra.mxu0 0.0
          %990 = vmatprep.subr.mxu0 0.0
          %991 = vmatpush2.msra.mxu0 0.0
          %992 = vmatprep.subr.mxu0 0.0
          %993 = vmatpush2.msra.mxu0 0.0
          %994 = vmatprep.subr.mxu0 0.0
          %995 = vmatpush2.msra.mxu0 0.0
          %996 = vmatprep.subr.mxu0 0.0
          %997 = vmatpush2.msra.mxu0 0.0
          %998 = vmatprep.subr.mxu0 0.0
          %999 = vmatpush2.msra.mxu0 0.0
          %1000 = vmatprep.subr.mxu0 0.0
          %1001 = vmatpush2.msra.mxu0 0.0
          %1002 = vmatprep.subr.mxu0 0.0
          %1003 = vmatpush2.msra.mxu0 0.0
          %1004 = vmatprep.mubr.f32.mxu0 0.0
          %1005 = vmatmul.mubr.f32.gmra.mxu0 %v914
          %v1006 = vpop.f32.mrf.mxu0
          %v1007 = vadd.f32 %v939, %v1006
          %v1008 = vpop.f32.mrf.mxu0
          %1009 = vmatprep.mubr.f32.mxu0 0.0
          %1010 = vmatmul.mubr.f32.gmra.mxu0 %v915
          %v1011 = vpop.f32.mrf.mxu0
          %v1012 = vadd.f32 %v939, %v1011
          %v1013 = vpop.f32.mrf.mxu0
          %1014 = vmatprep.mubr.f32.mxu0 0.0
          %1015 = vmatmul.mubr.f32.gmra.mxu0 %v916
          %v1016 = vpop.f32.mrf.mxu0
          %v1017 = vadd.f32 %v939, %v1016
          %v1018 = vpop.f32.mrf.mxu0
          %1019 = vmatprep.mubr.f32.mxu0 0.0
          %1020 = vmatmul.mubr.f32.gmra.mxu0 %v917
          %v1021 = vpop.f32.mrf.mxu0
          %v1022 = vadd.f32 %v939, %v1021
          %v1023 = vpop.f32.mrf.mxu0
          %1024 = vmatprep.mubr.f32.mxu0 0.0
          %1025 = vmatmul.mubr.f32.gmra.mxu0 %v918
          %v1026 = vpop.f32.mrf.mxu0
          %v1027 = vadd.f32 %v939, %v1026
          %v1028 = vpop.f32.mrf.mxu0
          %1029 = vmatprep.mubr.f32.mxu0 0.0
          %1030 = vmatmul.mubr.f32.gmra.mxu0 %v919
          %v1031 = vpop.f32.mrf.mxu0
          %v1032 = vadd.f32 %v939, %v1031
          %v1033 = vpop.f32.mrf.mxu0
          %1034 = vdwg.mxu0
          %v1035 = vmax.f32 %v1007, 0.0
          %v1036 = vmax.f32 %v1012, 0.0
          %v1037 = vmax.f32 %v1017, 0.0
          %v1038 = vmax.f32 %v1022, 0.0
          %v1039 = vmax.f32 %v1027, 0.0
          %v1040 = vmax.f32 %v1032, 0.0
          %v1041 = vsel %vm868, 1, 0
          %v1042 = vsel %vm869, 1, 0
          %v1043 = vsel %vm870, 1, 0
          %v1044 = vsel %vm871, 1, 0
          %v1045 = vsel %vm872, 1, 0
          %v1046 = vsel %vm873, 1, 0
          %vm1047 = vcmp.eq.s32.totalorder %v1041, 1
          %vm1048 = vcmp.eq.s32.totalorder %v1042, 1
          %vm1049 = vcmp.eq.s32.totalorder %v1043, 1
          %vm1050 = vcmp.eq.s32.totalorder %v1044, 1
          %vm1051 = vcmp.eq.s32.totalorder %v1045, 1
          %vm1052 = vcmp.eq.s32.totalorder %v1046, 1
          %v1053 = vsel %vm1047, %v1035, 0.0
          %v1054 = vsel %vm1048, %v1036, 0.0
          %v1055 = vsel %vm1049, %v1037, 0.0
          %v1056 = vsel %vm1050, %v1038, 0.0
          %v1057 = vsel %vm1051, %v1039, 0.0
          %v1058 = vsel %vm1052, %v1040, 0.0
          %v1059 = vadd.f32 %v1053, %v1054
          %v1060 = vadd.f32 %v1059, %v1055
          %v1061 = vadd.f32 %v1060, %v1056
          %v1062 = vadd.f32 %v1061, %v1057
          %v1063 = vadd.f32 %v1062, %v1058
          %v1064 = vrot.slane %v1063, 4
          %v1065 = vadd.f32 %v1063, %v1064
          %v1066 = vrot.slane %v1065, 2
          %v1067 = vadd.f32 %v1065, %v1066
          %v1068 = vrot.slane %v1067, 1
          %v1069 = vadd.f32 %v1067, %v1068
          %v1070 = vmul.f32 %v1069, 0.027777778
          %v1071 = vmul.f32 %v1053, %v1053
          %v1072 = vmul.f32 %v1054, %v1054
          %v1073 = vmul.f32 %v1055, %v1055
          %v1074 = vmul.f32 %v1056, %v1056
          %v1075 = vmul.f32 %v1057, %v1057
          %v1076 = vmul.f32 %v1058, %v1058
          %v1077 = vadd.f32 %v1071, %v1072
          %v1078 = vadd.f32 %v1077, %v1073
          %v1079 = vadd.f32 %v1078, %v1074
          %v1080 = vadd.f32 %v1079, %v1075
          %v1081 = vadd.f32 %v1080, %v1076
          %v1082 = vrot.slane %v1081, 4
          %v1083 = vadd.f32 %v1081, %v1082
          %v1084 = vrot.slane %v1083, 2
          %v1085 = vadd.f32 %v1083, %v1084
          %v1086 = vrot.slane %v1085, 1
          %v1087 = vadd.f32 %v1085, %v1086
          %v1088 = vmul.f32 %v1087, 0.027777778
          %v1089 = vmul.f32 %v1070, %v1070
          %v1090 = vsub.f32 %v1088, %v1089
          %v1091 = vadd.f32 %v1090, 1e-05
          %v1092 = vrsqrt.pop %v1091
          %v1093 = vmul.f32 %v878, %v1092
          %v1094 = vmul.f32 %v1070, %v1093
          %v1095 = vsub.f32 %v881, %v1094
          %v1096 = vlaneseq
          %v1097 = vshrl.u32 %v1096, 7
          %v1098 = vsub.s32 0, %v1097
          %v1099 = vrot.slane %v1093, %v1098
          %v1100 = vmul.f32 %v1035, %v1099
          %v1101 = vmul.f32 %v1036, %v1099
          %v1102 = vmul.f32 %v1037, %v1099
          %v1103 = vmul.f32 %v1038, %v1099
          %v1104 = vmul.f32 %v1039, %v1099
          %v1105 = vmul.f32 %v1040, %v1099
          %v1106 = vlaneseq
          %v1107 = vshrl.u32 %v1106, 7
          %v1108 = vsub.s32 0, %v1107
          %v1109 = vrot.slane %v1095, %v1108
          %v1110 = vadd.f32 %v1100, %v1109
          %v1111 = vadd.f32 %v1101, %v1109
          %v1112 = vadd.f32 %v1102, %v1109
          %v1113 = vadd.f32 %v1103, %v1109
          %v1114 = vadd.f32 %v1104, %v1109
          %v1115 = vadd.f32 %v1105, %v1109
          %s1116 = scalar_lea.vmem [#allocation5], 128
          %v1117 = vld [vmem:[%s1116] sm:$0xff]
          %v1118 = vld [vmem:[%s1116 + $0x8] sm:$0xff]
          %v1119 = vld [vmem:[%s1116 + $0x10] sm:$0xff]
          %v1120 = vld [vmem:[%s1116 + $0x18] sm:$0xff]
          %v1121 = vld [vmem:[%s1116 + $0x20] sm:$0xff]
          %v1122 = vld [vmem:[%s1116 + $0x28] sm:$0xff]
          %v1123 = vld [vmem:[%s1116 + $0x30] sm:$0xff]
          %v1124 = vld [vmem:[%s1116 + $0x38] sm:$0xff]
          %v1125 = vld [vmem:[%s1116 + $0x40] sm:$0xff]
          %v1126 = vld [vmem:[%s1116 + $0x48] sm:$0xff]
          %v1127 = vld [vmem:[%s1116 + $0x50] sm:$0xff]
          %v1128 = vld [vmem:[%s1116 + $0x58] sm:$0xff]
          %v1129 = vld [vmem:[%s1116 + $0x60] sm:$0xff]
          %v1130 = vld [vmem:[%s1116 + $0x68] sm:$0xff]
          %v1131 = vld [vmem:[%s1116 + $0x70] sm:$0xff]
          %v1132 = vld [vmem:[%s1116 + $0x78] sm:$0xff]
          %v1133 = vlaneseq
          %v1134 = vshrl.u32 %v1133, 7
          %v1135 = vsub.s32 0, %v1134
          %v1136 = vrot.slane %v875, %v1135
          %1137 = vmatprep.subr.mxu0 0.0
          %1138 = vmatpush1.msra.mxu0 %v1132
          %1139 = vmatprep.subr.mxu0 0.0
          %1140 = vmatpush1.msra.mxu0 %v1131
          %1141 = vmatprep.subr.mxu0 0.0
          %1142 = vmatpush1.msra.mxu0 %v1130
          %1143 = vmatprep.subr.mxu0 0.0
          %1144 = vmatpush1.msra.mxu0 %v1129
          %1145 = vmatprep.subr.mxu0 0.0
          %1146 = vmatpush1.msra.mxu0 %v1128
          %1147 = vmatprep.subr.mxu0 0.0
          %1148 = vmatpush1.msra.mxu0 %v1127
          %1149 = vmatprep.subr.mxu0 0.0
          %1150 = vmatpush1.msra.mxu0 %v1126
          %1151 = vmatprep.subr.mxu0 0.0
          %1152 = vmatpush1.msra.mxu0 %v1125
          %1153 = vmatprep.subr.mxu0 0.0
          %1154 = vmatpush1.msra.mxu0 %v1124
          %1155 = vmatprep.subr.mxu0 0.0
          %1156 = vmatpush1.msra.mxu0 %v1123
          %1157 = vmatprep.subr.mxu0 0.0
          %1158 = vmatpush1.msra.mxu0 %v1122
          %1159 = vmatprep.subr.mxu0 0.0
          %1160 = vmatpush1.msra.mxu0 %v1121
          %1161 = vmatprep.subr.mxu0 0.0
          %1162 = vmatpush1.msra.mxu0 %v1120
          %1163 = vmatprep.subr.mxu0 0.0
          %1164 = vmatpush1.msra.mxu0 %v1119
          %1165 = vmatprep.subr.mxu0 0.0
          %1166 = vmatpush1.msra.mxu0 %v1118
          %1167 = vmatprep.subr.mxu0 0.0
          %1168 = vmatpush1.msra.mxu0 %v1117
          %1169 = vmatprep.subr.mxu0 0.0
          %1170 = vmatpush2.msra.mxu0 0.0
          %1171 = vmatprep.subr.mxu0 0.0
          %1172 = vmatpush2.msra.mxu0 0.0
          %1173 = vmatprep.subr.mxu0 0.0
          %1174 = vmatpush2.msra.mxu0 0.0
          %1175 = vmatprep.subr.mxu0 0.0
          %1176 = vmatpush2.msra.mxu0 0.0
          %1177 = vmatprep.subr.mxu0 0.0
          %1178 = vmatpush2.msra.mxu0 0.0
          %1179 = vmatprep.subr.mxu0 0.0
          %1180 = vmatpush2.msra.mxu0 0.0
          %1181 = vmatprep.subr.mxu0 0.0
          %1182 = vmatpush2.msra.mxu0 0.0
          %1183 = vmatprep.subr.mxu0 0.0
          %1184 = vmatpush2.msra.mxu0 0.0
          %1185 = vmatprep.subr.mxu0 0.0
          %1186 = vmatpush2.msra.mxu0 0.0
          %1187 = vmatprep.subr.mxu0 0.0
          %1188 = vmatpush2.msra.mxu0 0.0
          %1189 = vmatprep.subr.mxu0 0.0
          %1190 = vmatpush2.msra.mxu0 0.0
          %1191 = vmatprep.subr.mxu0 0.0
          %1192 = vmatpush2.msra.mxu0 0.0
          %1193 = vmatprep.subr.mxu0 0.0
          %1194 = vmatpush2.msra.mxu0 0.0
          %1195 = vmatprep.subr.mxu0 0.0
          %1196 = vmatpush2.msra.mxu0 0.0
          %1197 = vmatprep.subr.mxu0 0.0
          %1198 = vmatpush2.msra.mxu0 0.0
          %1199 = vmatprep.subr.mxu0 0.0
          %1200 = vmatpush2.msra.mxu0 0.0
          %1201 = vmatprep.mubr.f32.mxu0 0.0
          %1202 = vmatmul.mubr.f32.gmra.mxu0 %v1110
          %v1203 = vpop.f32.mrf.mxu0
          %v1204 = vadd.f32 %v1136, %v1203
          %v1205 = vpop.f32.mrf.mxu0
          %1206 = vmatprep.mubr.f32.mxu0 0.0
          %1207 = vmatmul.mubr.f32.gmra.mxu0 %v1111
          %v1208 = vpop.f32.mrf.mxu0
          %v1209 = vadd.f32 %v1136, %v1208
          %v1210 = vpop.f32.mrf.mxu0
          %1211 = vmatprep.mubr.f32.mxu0 0.0
          %1212 = vmatmul.mubr.f32.gmra.mxu0 %v1112
          %v1213 = vpop.f32.mrf.mxu0
          %v1214 = vadd.f32 %v1136, %v1213
          %v1215 = vpop.f32.mrf.mxu0
          %1216 = vmatprep.mubr.f32.mxu0 0.0
          %1217 = vmatmul.mubr.f32.gmra.mxu0 %v1113
          %v1218 = vpop.f32.mrf.mxu0
          %v1219 = vadd.f32 %v1136, %v1218
          %v1220 = vpop.f32.mrf.mxu0
          %1221 = vmatprep.mubr.f32.mxu0 0.0
          %1222 = vmatmul.mubr.f32.gmra.mxu0 %v1114
          %v1223 = vpop.f32.mrf.mxu0
          %v1224 = vadd.f32 %v1136, %v1223
          %v1225 = vpop.f32.mrf.mxu0
          %1226 = vmatprep.mubr.f32.mxu0 0.0
          %1227 = vmatmul.mubr.f32.gmra.mxu0 %v1115
          %v1228 = vpop.f32.mrf.mxu0
          %v1229 = vadd.f32 %v1136, %v1228
          %v1230 = vpop.f32.mrf.mxu0
          %1231 = vdwg.mxu0
          %v1232 = vmax.f32 %v1204, 0.0
          %v1233 = vmax.f32 %v1209, 0.0
          %v1234 = vmax.f32 %v1214, 0.0
          %v1235 = vmax.f32 %v1219, 0.0
          %v1236 = vmax.f32 %v1224, 0.0
          %v1237 = vmax.f32 %v1229, 0.0
          %v1238 = vsel %vm1047, %v1232, 0.0
          %v1239 = vsel %vm1048, %v1233, 0.0
          %v1240 = vsel %vm1049, %v1234, 0.0
          %v1241 = vsel %vm1050, %v1235, 0.0
          %v1242 = vsel %vm1051, %v1236, 0.0
          %v1243 = vsel %vm1052, %v1237, 0.0
          %v1244 = vadd.f32 %v1238, %v1239
          %v1245 = vadd.f32 %v1244, %v1240
          %v1246 = vadd.f32 %v1245, %v1241
          %v1247 = vadd.f32 %v1246, %v1242
          %v1248 = vadd.f32 %v1247, %v1243
          %v1249 = vrot.slane %v1248, 4
          %v1250 = vadd.f32 %v1248, %v1249
          %v1251 = vrot.slane %v1250, 2
          %v1252 = vadd.f32 %v1250, %v1251
          %v1253 = vrot.slane %v1252, 1
          %v1254 = vadd.f32 %v1252, %v1253
          %v1255 = vmul.f32 %v1254, 0.027777778
          %v1256 = vmul.f32 %v1238, %v1238
          %v1257 = vmul.f32 %v1239, %v1239
          %v1258 = vmul.f32 %v1240, %v1240
          %v1259 = vmul.f32 %v1241, %v1241
          %v1260 = vmul.f32 %v1242, %v1242
          %v1261 = vmul.f32 %v1243, %v1243
          %v1262 = vadd.f32 %v1256, %v1257
          %v1263 = vadd.f32 %v1262, %v1258
          %v1264 = vadd.f32 %v1263, %v1259
          %v1265 = vadd.f32 %v1264, %v1260
          %v1266 = vadd.f32 %v1265, %v1261
          %v1267 = vrot.slane %v1266, 4
          %v1268 = vadd.f32 %v1266, %v1267
          %v1269 = vrot.slane %v1268, 2
          %v1270 = vadd.f32 %v1268, %v1269
          %v1271 = vrot.slane %v1270, 1
          %v1272 = vadd.f32 %v1270, %v1271
          %v1273 = vmul.f32 %v1272, 0.027777778
          %v1274 = vmul.f32 %v1255, %v1255
          %v1275 = vsub.f32 %v1273, %v1274
          %v1276 = vadd.f32 %v1275, 1e-05
          %v1277 = vrsqrt.pop %v1276
          %v1278 = vmul.f32 %v879, %v1277
          %v1279 = vmul.f32 %v1255, %v1278
          %v1280 = vsub.f32 %v882, %v1279
          %v1281 = vlaneseq
          %v1282 = vshrl.u32 %v1281, 7
          %v1283 = vsub.s32 0, %v1282
          %v1284 = vrot.slane %v1278, %v1283
          %v1285 = vmul.f32 %v1232, %v1284
          %v1286 = vmul.f32 %v1233, %v1284
          %v1287 = vmul.f32 %v1234, %v1284
          %v1288 = vmul.f32 %v1235, %v1284
          %v1289 = vmul.f32 %v1236, %v1284
          %v1290 = vmul.f32 %v1237, %v1284
          %v1291 = vlaneseq
          %v1292 = vshrl.u32 %v1291, 7
          %v1293 = vsub.s32 0, %v1292
          %v1294 = vrot.slane %v1280, %v1293
          %v1295 = vadd.f32 %v1285, %v1294
          %v1296 = vadd.f32 %v1286, %v1294
          %v1297 = vadd.f32 %v1287, %v1294
          %v1298 = vadd.f32 %v1288, %v1294
          %v1299 = vadd.f32 %v1289, %v1294
          %v1300 = vadd.f32 %v1290, %v1294
          %s1301 = scalar_lea.vmem [#allocation5], 256
          %v1302 = vld [vmem:[%s1301] sm:$0xff]
          %v1303 = vld [vmem:[%s1301 + $0x8] sm:$0xff]
          %v1304 = vld [vmem:[%s1301 + $0x10] sm:$0xff]
          %v1305 = vld [vmem:[%s1301 + $0x18] sm:$0xff]
          %v1306 = vld [vmem:[%s1301 + $0x20] sm:$0xff]
          %v1307 = vld [vmem:[%s1301 + $0x28] sm:$0xff]
          %v1308 = vld [vmem:[%s1301 + $0x30] sm:$0xff]
          %v1309 = vld [vmem:[%s1301 + $0x38] sm:$0xff]
          %v1310 = vld [vmem:[%s1301 + $0x40] sm:$0xff]
          %v1311 = vld [vmem:[%s1301 + $0x48] sm:$0xff]
          %v1312 = vld [vmem:[%s1301 + $0x50] sm:$0xff]
          %v1313 = vld [vmem:[%s1301 + $0x58] sm:$0xff]
          %v1314 = vld [vmem:[%s1301 + $0x60] sm:$0xff]
          %v1315 = vld [vmem:[%s1301 + $0x68] sm:$0xff]
          %v1316 = vld [vmem:[%s1301 + $0x70] sm:$0xff]
          %v1317 = vld [vmem:[%s1301 + $0x78] sm:$0xff]
          %v1318 = vlaneseq
          %v1319 = vshrl.u32 %v1318, 7
          %v1320 = vsub.s32 0, %v1319
          %v1321 = vrot.slane %v876, %v1320
          %1322 = vmatprep.subr.mxu0 0.0
          %1323 = vmatpush1.msra.mxu0 %v1317
          %1324 = vmatprep.subr.mxu0 0.0
          %1325 = vmatpush1.msra.mxu0 %v1316
          %1326 = vmatprep.subr.mxu0 0.0
          %1327 = vmatpush1.msra.mxu0 %v1315
          %1328 = vmatprep.subr.mxu0 0.0
          %1329 = vmatpush1.msra.mxu0 %v1314
          %1330 = vmatprep.subr.mxu0 0.0
          %1331 = vmatpush1.msra.mxu0 %v1313
          %1332 = vmatprep.subr.mxu0 0.0
          %1333 = vmatpush1.msra.mxu0 %v1312
          %1334 = vmatprep.subr.mxu0 0.0
          %1335 = vmatpush1.msra.mxu0 %v1311
          %1336 = vmatprep.subr.mxu0 0.0
          %1337 = vmatpush1.msra.mxu0 %v1310
          %1338 = vmatprep.subr.mxu0 0.0
          %1339 = vmatpush1.msra.mxu0 %v1309
          %1340 = vmatprep.subr.mxu0 0.0
          %1341 = vmatpush1.msra.mxu0 %v1308
          %1342 = vmatprep.subr.mxu0 0.0
          %1343 = vmatpush1.msra.mxu0 %v1307
          %1344 = vmatprep.subr.mxu0 0.0
          %1345 = vmatpush1.msra.mxu0 %v1306
          %1346 = vmatprep.subr.mxu0 0.0
          %1347 = vmatpush1.msra.mxu0 %v1305
          %1348 = vmatprep.subr.mxu0 0.0
          %1349 = vmatpush1.msra.mxu0 %v1304
          %1350 = vmatprep.subr.mxu0 0.0
          %1351 = vmatpush1.msra.mxu0 %v1303
          %1352 = vmatprep.subr.mxu0 0.0
          %1353 = vmatpush1.msra.mxu0 %v1302
          %1354 = vmatprep.subr.mxu0 0.0
          %1355 = vmatpush2.msra.mxu0 0.0
          %1356 = vmatprep.subr.mxu0 0.0
          %1357 = vmatpush2.msra.mxu0 0.0
          %1358 = vmatprep.subr.mxu0 0.0
          %1359 = vmatpush2.msra.mxu0 0.0
          %1360 = vmatprep.subr.mxu0 0.0
          %1361 = vmatpush2.msra.mxu0 0.0
          %1362 = vmatprep.subr.mxu0 0.0
          %1363 = vmatpush2.msra.mxu0 0.0
          %1364 = vmatprep.subr.mxu0 0.0
          %1365 = vmatpush2.msra.mxu0 0.0
          %1366 = vmatprep.subr.mxu0 0.0
          %1367 = vmatpush2.msra.mxu0 0.0
          %1368 = vmatprep.subr.mxu0 0.0
          %1369 = vmatpush2.msra.mxu0 0.0
          %1370 = vmatprep.subr.mxu0 0.0
          %1371 = vmatpush2.msra.mxu0 0.0
          %1372 = vmatprep.subr.mxu0 0.0
          %1373 = vmatpush2.msra.mxu0 0.0
          %1374 = vmatprep.subr.mxu0 0.0
          %1375 = vmatpush2.msra.mxu0 0.0
          %1376 = vmatprep.subr.mxu0 0.0
          %1377 = vmatpush2.msra.mxu0 0.0
          %1378 = vmatprep.subr.mxu0 0.0
          %1379 = vmatpush2.msra.mxu0 0.0
          %1380 = vmatprep.subr.mxu0 0.0
          %1381 = vmatpush2.msra.mxu0 0.0
          %1382 = vmatprep.subr.mxu0 0.0
          %1383 = vmatpush2.msra.mxu0 0.0
          %1384 = vmatprep.subr.mxu0 0.0
          %1385 = vmatpush2.msra.mxu0 0.0
          %1386 = vmatprep.mubr.f32.mxu0 0.0
          %1387 = vmatmul.mubr.f32.gmra.mxu0 %v1295
          %v1388 = vpop.f32.mrf.mxu0
          %v1389 = vadd.f32 %v1321, %v1388
          %v1390 = vpop.f32.mrf.mxu0
          %1391 = vmatprep.mubr.f32.mxu0 0.0
          %1392 = vmatmul.mubr.f32.gmra.mxu0 %v1296
          %v1393 = vpop.f32.mrf.mxu0
          %v1394 = vadd.f32 %v1321, %v1393
          %v1395 = vpop.f32.mrf.mxu0
          %1396 = vmatprep.mubr.f32.mxu0 0.0
          %1397 = vmatmul.mubr.f32.gmra.mxu0 %v1297
          %v1398 = vpop.f32.mrf.mxu0
          %v1399 = vadd.f32 %v1321, %v1398
          %v1400 = vpop.f32.mrf.mxu0
          %1401 = vmatprep.mubr.f32.mxu0 0.0
          %1402 = vmatmul.mubr.f32.gmra.mxu0 %v1298
          %v1403 = vpop.f32.mrf.mxu0
          %v1404 = vadd.f32 %v1321, %v1403
          %v1405 = vpop.f32.mrf.mxu0
          %1406 = vmatprep.mubr.f32.mxu0 0.0
          %1407 = vmatmul.mubr.f32.gmra.mxu0 %v1299
          %v1408 = vpop.f32.mrf.mxu0
          %v1409 = vadd.f32 %v1321, %v1408
          %v1410 = vpop.f32.mrf.mxu0
          %1411 = vmatprep.mubr.f32.mxu0 0.0
          %1412 = vmatmul.mubr.f32.gmra.mxu0 %v1300
          %v1413 = vpop.f32.mrf.mxu0
          %v1414 = vadd.f32 %v1321, %v1413
          %v1415 = vpop.f32.mrf.mxu0
          %1416 = vdwg.mxu0
          %v1417 = vmax.f32 %v1389, 0.0
          %v1418 = vmax.f32 %v1394, 0.0
          %v1419 = vmax.f32 %v1399, 0.0
          %v1420 = vmax.f32 %v1404, 0.0
          %v1421 = vmax.f32 %v1409, 0.0
          %v1422 = vmax.f32 %v1414, 0.0
          %v1423 = vlaneseq
          %v1424 = vand.u32 %v1423, 127
          %vm1425 = vcmp.lt.s32.totalorder %v1424, 10
          %v1426 = vsel %vm1425, %v1417, -1e+30
          %v1427 = vsel %vm1425, %v1418, -1e+30
          %v1428 = vsel %vm1425, %v1419, -1e+30
          %v1429 = vsel %vm1425, %v1420, -1e+30
          %v1430 = vsel %vm1425, %v1421, -1e+30
          %v1431 = vsel %vm1425, %v1422, -1e+30
          %1432 = vmax.xlane.f32.xlu0 %v1426
          %v1433 = vpop.xlane.xlu0 %1432
          %1434 = vmax.xlane.f32.xlu0 %v1427
          %v1435 = vpop.xlane.xlu0 %1434
          %1436 = vmax.xlane.f32.xlu0 %v1428
          %v1437 = vpop.xlane.xlu0 %1436
          %1438 = vmax.xlane.f32.xlu0 %v1429
          %v1439 = vpop.xlane.xlu0 %1438
          %1440 = vmax.xlane.f32.xlu0 %v1430
          %v1441 = vpop.xlane.xlu0 %1440
          %1442 = vmax.xlane.f32.xlu0 %v1431
          %v1443 = vpop.xlane.xlu0 %1442
          %v1444 = vsub.f32 %v1426, %v1433
          %v1445 = vsub.f32 %v1427, %v1435
          %v1446 = vsub.f32 %v1428, %v1437
          %v1447 = vsub.f32 %v1429, %v1439
          %v1448 = vsub.f32 %v1430, %v1441
          %v1449 = vsub.f32 %v1431, %v1443
          %v1450 = vmul.f32 %v1444, 1.442695
          %v1451 = vpow.pop %v1450
          %v1452 = vmul.f32 %v1445, 1.442695
          %v1453 = vpow.pop %v1452
          %v1454 = vmul.f32 %v1446, 1.442695
          %v1455 = vpow.pop %v1454
          %v1456 = vmul.f32 %v1447, 1.442695
          %v1457 = vpow.pop %v1456
          %v1458 = vmul.f32 %v1448, 1.442695
          %v1459 = vpow.pop %v1458
          %v1460 = vmul.f32 %v1449, 1.442695
          %v1461 = vpow.pop %v1460
          %1462 = vadd.xlane.f32.xlu0 %v1451
          %v1463 = vpop.xlane.xlu0 %1462
          %1464 = vadd.xlane.f32.xlu0 %v1453
          %v1465 = vpop.xlane.xlu0 %1464
          %1466 = vadd.xlane.f32.xlu0 %v1455
          %v1467 = vpop.xlane.xlu0 %1466
          %1468 = vadd.xlane.f32.xlu0 %v1457
          %v1469 = vpop.xlane.xlu0 %1468
          %1470 = vadd.xlane.f32.xlu0 %v1459
          %v1471 = vpop.xlane.xlu0 %1470
          %1472 = vadd.xlane.f32.xlu0 %v1461
          %v1473 = vpop.xlane.xlu0 %1472
          %v1474 = vrcp.pop %v1463
          %v1475 = vrcp.pop %v1465
          %v1476 = vrcp.pop %v1467
          %v1477 = vrcp.pop %v1469
          %v1478 = vrcp.pop %v1471
          %v1479 = vrcp.pop %v1473
          %v1480 = vmul.f32 %v1451, %v1474
          %v1481 = vmul.f32 %v1453, %v1475
          %v1482 = vmul.f32 %v1455, %v1476
          %v1483 = vmul.f32 %v1457, %v1477
          %v1484 = vmul.f32 %v1459, %v1478
          %v1485 = vmul.f32 %v1461, %v1479
          %1486 = vst [vmem:[%s4] sm:$0xff] %v1480
          %1487 = vst [vmem:[%s4 + $0x8] sm:$0xff] %v1481
          %1488 = vst [vmem:[%s4 + $0x10] sm:$0xff] %v1482
          %1489 = vst [vmem:[%s4 + $0x18] sm:$0xff] %v1483
          %1490 = vst [vmem:[%s4 + $0x20] sm:$0xff] %v1484
          %1491 = vst [vmem:[%s4 + $0x28] sm:$0xff] %v1485
        $region48: #{nn_layernorm_forward.1} parent=35 // pred_fallthru
          _
        // Predicated region
        $region49: #{nn_layernorm_forward.1} parent=35 // pred_check
          %p1492 = pneg %p118
        $region50: #{nn_layernorm_forward.1} parent=35 // pred_check_branch
          %1494 = sbr.rel (%p1492) target = $region52
        $region51: #{nn_layernorm_forward.1} parent=35 // pred_region
          _
        $region52: #{nn_layernorm_forward.1} parent=35 // pred_fallthru
          _
        // Predicated region
        $region53: #{nn_layernorm_forward.1} parent=35 // pred_check
          %p1495 = pneg %p118
        $region54: #{nn_layernorm_forward.1} parent=35 // pred_check_branch
          %1497 = sbr.rel (%p1495) target = $region56
        $region55: #{nn_layernorm_forward.1} parent=35 // pred_region
          _
        $region56: #{nn_layernorm_forward.1} parent=35 // pred_fallthru
          _
      $region36: #{nn_layernorm_forward.1} parent=5 // pred_fallthru
        _
      %p1498 = scmp.le.s32.totalorder 2, %s11
      // Predicated region
      $region57: #{nn_layernorm_forward.1} parent=5 // pred_check
        %p1499 = pneg %p1498
      $region58: #{nn_layernorm_forward.1} parent=5 // pred_check_branch
        %1501 = sbr.rel (%p1499) target = $region60
      $region59: #{nn_layernorm_forward.1} parent=5 // pred_region
        %s1502 = ssub.s32 %s11, 2
      $region60: #{nn_layernorm_forward.1} parent=5 // pred_fallthru
        _
    $region6: #{nn_layernorm_forward.1} parent=1 // loop_footer
      %s15 = sadd.s32 1, %s11
    $region7: #{nn_layernorm_forward.1} parent=1 // loop_footer_branch
      %10 = sbr.rel target = $region3
    $region8: #{nn_layernorm_forward.1} parent=1 // loop_exit
      _
    %1503 = vsyncpa [#allocation6], 1
    %s1504 = scalar_lea.sflag [#allocation6], 1
    %1505 = vsyncpa %s1504, 1

</llo_original>
